<compile_context>
chip_gen: v6e
topology: v6e:2x2x1
jax: 0.10.0
libtpu: 0.0.40
codegen_flags: <defaults>
</compile_context>

<pallas_src>
import functools
import numpy as np
import jax
import jax.numpy as jnp
from jax.experimental import pallas as pl
from jax.experimental.pallas import tpu as pltpu


# ----------------------------------------------------------------------------
# Fused 2-layer bidirectional LSTM kernel
# ----------------------------------------------------------------------------

def _bilstm2_kernel(x_ref,
                    w1f_ref, b1f_ref, w1b_ref, b1b_ref,
                    w2f_ref, b2f_ref, w2b_ref, b2b_ref,
                    out_f_ref, out_b_ref,
                    h1f_ref, h1b_ref,
                    *, L, B, H):
    """Two stacked bidirectional LSTM layers, fully VMEM-resident.

    Layout (time-major, features on the lane axis):
      x_ref          : (L, B, Dp)       bf16  layer-1 input (lane-padded)
      w{1,2}{f,b}_ref: (Din_k + H, 4H)  bf16  [W_ih ; W_hh], gate order i,f,g,o
      b{1,2}{f,b}_ref: (1, 4H)          f32   b_ih + b_hh
      out_{f,b}_ref  : (L, B, H)        f32   final-layer fw / bw hidden states
      h1{f,b}_ref    : (L, B, H)        bf16  layer-1 fw / bw hidden (scratch)
    """
    f32 = jnp.float32
    cdt = x_ref.dtype                       # MXU compute dtype (bf16)

    def sigmoid(v):                         # explicit exp form (EUP path)
        return 1.0 / (1.0 + jnp.exp(-v))

    def run_layer(read_x, wf_ref, bf_ref, wb_ref, bb_ref, of_ref, ob_ref):
        def step(t, carry):
            h_f, c_f, h_b, c_b = carry
            rt = L - 1 - t
            # One fused MXU dot per direction: [x_t | h_{t-1}] @ [W_ih ; W_hh].
            z_f = jnp.concatenate([read_x(t), h_f.astype(cdt)], axis=-1)
            z_b = jnp.concatenate([read_x(rt), h_b.astype(cdt)], axis=-1)
            g_f = jnp.dot(z_f, wf_ref[...],
                          preferred_element_type=f32) + bf_ref[...]
            g_b = jnp.dot(z_b, wb_ref[...],
                          preferred_element_type=f32) + bb_ref[...]

            def cell(g, c):                 # PyTorch gate order: i, f, g, o
                i = sigmoid(g[:, 0 * H:1 * H])
                f = sigmoid(g[:, 1 * H:2 * H])
                gg = jnp.tanh(g[:, 2 * H:3 * H])
                o = sigmoid(g[:, 3 * H:4 * H])
                c_new = f * c + i * gg      # cell state kept in f32
                h_new = o * jnp.tanh(c_new)
                return h_new, c_new

            h_f, c_f = cell(g_f, c_f)
            h_b, c_b = cell(g_b, c_b)
            of_ref[t] = h_f.astype(of_ref.dtype)
            ob_ref[rt] = h_b.astype(ob_ref.dtype)
            return h_f, c_f, h_b, c_b

        z0 = jnp.zeros((B, H), f32)
        jax.lax.fori_loop(0, L, step, (z0, z0, z0, z0))

    # ---- layer 1: reads the (embedded, lane-padded) protein sequence ----
    run_layer(lambda t: x_ref[t],
              w1f_ref, b1f_ref, w1b_ref, b1b_ref, h1f_ref, h1b_ref)

    # ---- layer 2: reads layer-1 bidirectional output [h_fw | h_bw] ----
    run_layer(lambda t: jnp.concatenate([h1f_ref[t], h1b_ref[t]], axis=-1),
              w2f_ref, b2f_ref, w2b_ref, b2b_ref, out_f_ref, out_b_ref)


# ----------------------------------------------------------------------------
# Host-side wrapper
# ----------------------------------------------------------------------------

def _pack_dir(w_ih, w_hh, b_ih, b_hh, d_pad, compute_dtype):
    """Pack one direction's PyTorch-layout LSTM params for the kernel."""
    wx = w_ih.T                              # (Din, 4H)
    if d_pad:
        wx = jnp.pad(wx, ((0, d_pad), (0, 0)))
    w = jnp.concatenate([wx, w_hh.T], axis=0)            # (Din_pad + H, 4H)
    b = (b_ih + b_hh).reshape(1, -1).astype(jnp.float32)  # fold both biases
    return w.astype(compute_dtype), b


def bilstm_hidden_forward(params, x, *, hidden=128, compute_dtype=jnp.bfloat16):
    """BiLSTM_hidden.forward: x (B, L, lstm_dim) float32 -> (B, L, 2*hidden)."""
    B, L, D = x.shape
    H = hidden
    assert len(params["layers"]) == 2
    d_pad = (-D) % 128                       # lane-pad the input features
    Dp = D + d_pad

    xt = jnp.transpose(x, (1, 0, 2))         # time-major (L, B, D)
    if d_pad:
        xt = jnp.pad(xt, ((0, 0), (0, 0), (0, d_pad)))
    xt = xt.astype(compute_dtype)

    l1, l2 = params["layers"]
    w1f, b1f = _pack_dir(**l1["fw"], d_pad=d_pad, compute_dtype=compute_dtype)
    w1b, b1b = _pack_dir(**l1["bw"], d_pad=d_pad, compute_dtype=compute_dtype)
    w2f, b2f = _pack_dir(**l2["fw"], d_pad=0, compute_dtype=compute_dtype)
    w2b, b2b = _pack_dir(**l2["bw"], d_pad=0, compute_dtype=compute_dtype)

    def full(shape):
        return pl.BlockSpec(shape, lambda i, _s=shape: (0,) * len(_s))

    out_f, out_b = pl.pallas_call(
        functools.partial(_bilstm2_kernel, L=L, B=B, H=H),
        grid=(1,),
        in_specs=[full((L, B, Dp)),
                  full((Dp + H, 4 * H)), full((1, 4 * H)),
                  full((Dp + H, 4 * H)), full((1, 4 * H)),
                  full((2 * H + H, 4 * H)), full((1, 4 * H)),
                  full((2 * H + H, 4 * H)), full((1, 4 * H))],
        out_specs=[full((L, B, H)), full((L, B, H))],
        out_shape=[jax.ShapeDtypeStruct((L, B, H), jnp.float32),
                   jax.ShapeDtypeStruct((L, B, H), jnp.float32)],
        scratch_shapes=[pltpu.VMEM((L, B, H), compute_dtype),   # layer-1 fw
                        pltpu.VMEM((L, B, H), compute_dtype)],  # layer-1 bw
        compiler_params=pltpu.CompilerParams(
            dimension_semantics=("arbitrary",),
            vmem_limit_bytes=32 * 1024 * 1024),
    )(xt, w1f, b1f, w1b, b1b, w2f, b2f, w2b, b2b)

    # (L, B, H)+(L, B, H) -> (B, L, 2H), matching nn.LSTM(batch_first=True).
    return jnp.transpose(jnp.concatenate([out_f, out_b], axis=-1), (1, 0, 2))


# ----------------------------------------------------------------------------
# Parameter init (nn.LSTM default: U(-1/sqrt(H), 1/sqrt(H)) for all params)
# ----------------------------------------------------------------------------

def init_bilstm_params(key, *, lstm_dim=64, hidden_dim=128, num_layers=2):
    H = hidden_dim
    bound = 1.0 / float(np.sqrt(H))
    keys = iter(jax.random.split(key, num_layers * 2 * 4))

    def u(shape):
        return jax.random.uniform(next(keys), shape, jnp.float32, -bound, bound)

    layers = []
    for layer in range(num_layers):
        din = lstm_dim if layer == 0 else 2 * H

        def direction(din=din):
            return {"w_ih": u((4 * H, din)), "w_hh": u((4 * H, H)),
                    "b_ih": u((4 * H,)), "b_hh": u((4 * H,))}

        layers.append({"fw": direction(), "bw": direction()})
    return {"layers": layers}


# ----------------------------------------------------------------------------
# Pure-JAX float32 reference (for a correctness cross-check)
# ----------------------------------------------------------------------------

def bilstm_hidden_reference(params, x, *, hidden=128):
    H = hidden

    def run_dir(inp, p, reverse):
        B = inp.shape[0]
        xs = jnp.swapaxes(inp, 0, 1)
        if reverse:
            xs = xs[::-1]

        def step(carry, xt):
            h, c = carry
            gates = xt @ p["w_ih"].T + h @ p["w_hh"].T + p["b_ih"] + p["b_hh"]
            i, f, g, o = jnp.split(gates, 4, axis=-1)
            c = jax.nn.sigmoid(f) * c + jax.nn.sigmoid(i) * jnp.tanh(g)
            h = jax.nn.sigmoid(o) * jnp.tanh(c)
            return (h, c), h

        init = (jnp.zeros((B, H), jnp.float32), jnp.zeros((B, H), jnp.float32))
        _, hs = jax.lax.scan(step, init, xs)
        if reverse:
            hs = hs[::-1]
        return jnp.swapaxes(hs, 0, 1)

    out = x
    for lp in params["layers"]:
        out = jnp.concatenate([run_dir(out, lp["fw"], False),
                               run_dir(out, lp["bw"], True)], axis=-1)
    return out


# ----------------------------------------------------------------------------
# Main
# ----------------------------------------------------------------------------

if __name__ == "__main__":
    key = jax.random.PRNGKey(0)
    kp, kx = jax.random.split(key)

    B, L, LSTM_DIM, HIDDEN = 2, 32, 64, 128
    params = init_bilstm_params(kp, lstm_dim=LSTM_DIM, hidden_dim=HIDDEN)

    # `protein`: already-embedded sequence features (batch_first), i.e. the
    # float tensor fed to nn.LSTM(64, 128, 2, batch_first=True, bidirectional=True).
    protein = jax.random.normal(kx, (B, L, LSTM_DIM), jnp.float32)

    fwd = jax.jit(functools.partial(bilstm_hidden_forward, hidden=HIDDEN))
    out = jax.block_until_ready(fwd(params, protein))

    assert out.shape == (B, L, 2 * HIDDEN), out.shape
    assert bool(jnp.all(jnp.isfinite(out)))

    ref = bilstm_hidden_reference(params, protein, hidden=HIDDEN)
    max_err = float(jnp.max(jnp.abs(out - ref)))
    # bf16 weights / f32 accumulation: expect ~1e-2 absolute; 0.1 catches logic bugs.
    assert max_err < 0.1, f"max abs error {max_err}"

    print("KERNEL_OK")
</pallas_src>

<mosaic_0001>
module attributes {stable_mosaic.version = 11 : i64} {
  func.func @_bilstm2_kernel(%arg0: i32, %arg1: memref<32x2x128xbf16, #tpu.memory_space<vmem>>, %arg2: memref<256x512xbf16, #tpu.memory_space<vmem>>, %arg3: memref<1x512xf32, #tpu.memory_space<vmem>>, %arg4: memref<256x512xbf16, #tpu.memory_space<vmem>>, %arg5: memref<1x512xf32, #tpu.memory_space<vmem>>, %arg6: memref<384x512xbf16, #tpu.memory_space<vmem>>, %arg7: memref<1x512xf32, #tpu.memory_space<vmem>>, %arg8: memref<384x512xbf16, #tpu.memory_space<vmem>>, %arg9: memref<1x512xf32, #tpu.memory_space<vmem>>, %arg10: memref<32x2x128xf32, #tpu.memory_space<vmem>>, %arg11: memref<32x2x128xf32, #tpu.memory_space<vmem>>, %arg12: memref<32x2x128xbf16, #tpu.memory_space<vmem>>, %arg13: memref<32x2x128xbf16, #tpu.memory_space<vmem>>) attributes {dimension_semantics = [#tpu.dimension_semantics<arbitrary>], iteration_bounds = array<i64: 1>, scalar_prefetch = 0 : i64, scratch_operands = 2 : i64, tpu.core_type = #tpu.core_type<tc>, window_params = [{pipeline_mode = #tpu.pipeline_mode<synchronous>, transform_indices = @transform_0, window_bounds = array<i64: 32, 2, 128>}, {pipeline_mode = #tpu.pipeline_mode<synchronous>, transform_indices = @transform_1, window_bounds = array<i64: 256, 512>}, {pipeline_mode = #tpu.pipeline_mode<synchronous>, transform_indices = @transform_2, window_bounds = array<i64: 1, 512>}, {pipeline_mode = #tpu.pipeline_mode<synchronous>, transform_indices = @transform_3, window_bounds = array<i64: 256, 512>}, {pipeline_mode = #tpu.pipeline_mode<synchronous>, transform_indices = @transform_4, window_bounds = array<i64: 1, 512>}, {pipeline_mode = #tpu.pipeline_mode<synchronous>, transform_indices = @transform_5, window_bounds = array<i64: 384, 512>}, {pipeline_mode = #tpu.pipeline_mode<synchronous>, transform_indices = @transform_6, window_bounds = array<i64: 1, 512>}, {pipeline_mode = #tpu.pipeline_mode<synchronous>, transform_indices = @transform_7, window_bounds = array<i64: 384, 512>}, {pipeline_mode = #tpu.pipeline_mode<synchronous>, transform_indices = @transform_8, window_bounds = array<i64: 1, 512>}, {pipeline_mode = #tpu.pipeline_mode<synchronous>, transform_indices = @transform_9, window_bounds = array<i64: 32, 2, 128>}, {pipeline_mode = #tpu.pipeline_mode<synchronous>, transform_indices = @transform_10, window_bounds = array<i64: 32, 2, 128>}]} {
    %cst = arith.constant 0.000000e+00 : f32
    %0 = vector.broadcast %cst : f32 to vector<2x128xf32>
    %c0_i32 = arith.constant 0 : i32
    %c32_i32 = arith.constant 32 : i32
    %1 = arith.addi %c0_i32, %c32_i32 : i32
    %c1_i32 = arith.constant 1 : i32
    %2:4 = scf.for %arg14 = %c0_i32 to %1 step %c1_i32 iter_args(%arg15 = %0, %arg16 = %0, %arg17 = %0, %arg18 = %0) -> (vector<2x128xf32>, vector<2x128xf32>, vector<2x128xf32>, vector<2x128xf32>)  : i32 {
      %c31_i32 = arith.constant 31 : i32
      %6 = arith.subi %c31_i32, %arg14 : i32
      %7 = arith.index_cast %arg14 : i32 to index
      %c0 = arith.constant 0 : index
      %c0_6 = arith.constant 0 : index
      %8 = vector.load %arg1[%7, %c0, %c0_6] : memref<32x2x128xbf16, #tpu.memory_space<vmem>>, vector<1x2x128xbf16>
      %9 = vector.shape_cast %8 : vector<1x2x128xbf16> to vector<2x128xbf16>
      %10 = arith.truncf %arg15 : vector<2x128xf32> to vector<2x128xbf16>
      %11 = tpu.concatenate %9, %10 in 1 : vector<2x128xbf16>, vector<2x128xbf16> -> vector<2x256xbf16>
      %12 = arith.index_cast %6 : i32 to index
      %c0_7 = arith.constant 0 : index
      %c0_8 = arith.constant 0 : index
      %13 = vector.load %arg1[%12, %c0_7, %c0_8] : memref<32x2x128xbf16, #tpu.memory_space<vmem>>, vector<1x2x128xbf16>
      %14 = vector.shape_cast %13 : vector<1x2x128xbf16> to vector<2x128xbf16>
      %15 = arith.truncf %arg17 : vector<2x128xf32> to vector<2x128xbf16>
      %16 = tpu.concatenate %14, %15 in 1 : vector<2x128xbf16>, vector<2x128xbf16> -> vector<2x256xbf16>
      %c0_9 = arith.constant 0 : index
      %c0_10 = arith.constant 0 : index
      %17 = vector.load %arg2[%c0_9, %c0_10] : memref<256x512xbf16, #tpu.memory_space<vmem>>, vector<256x512xbf16>
      %cst_11 = arith.constant dense<0.000000e+00> : vector<2x512xf32>
      %18 = tpu.matmul %11, %17, %cst_11 {dimension_numbers = #tpu.dot_dimension_numbers<[1], [0], [0], [1], [0, 0, 1, 1], [], []>} : vector<2x256xbf16>, vector<256x512xbf16>, vector<2x512xf32> -> vector<2x512xf32>
      %c0_12 = arith.constant 0 : index
      %c0_13 = arith.constant 0 : index
      %19 = vector.load %arg3[%c0_12, %c0_13] : memref<1x512xf32, #tpu.memory_space<vmem>>, vector<1x512xf32>
      %20 = vector.broadcast %19 : vector<1x512xf32> to vector<2x512xf32>
      %21 = arith.addf %18, %20 : vector<2x512xf32>
      %c0_14 = arith.constant 0 : index
      %c0_15 = arith.constant 0 : index
      %22 = vector.load %arg4[%c0_14, %c0_15] : memref<256x512xbf16, #tpu.memory_space<vmem>>, vector<256x512xbf16>
      %cst_16 = arith.constant dense<0.000000e+00> : vector<2x512xf32>
      %23 = tpu.matmul %16, %22, %cst_16 {dimension_numbers = #tpu.dot_dimension_numbers<[1], [0], [0], [1], [0, 0, 1, 1], [], []>} : vector<2x256xbf16>, vector<256x512xbf16>, vector<2x512xf32> -> vector<2x512xf32>
      %c0_17 = arith.constant 0 : index
      %c0_18 = arith.constant 0 : index
      %24 = vector.load %arg5[%c0_17, %c0_18] : memref<1x512xf32, #tpu.memory_space<vmem>>, vector<1x512xf32>
      %25 = vector.broadcast %24 : vector<1x512xf32> to vector<2x512xf32>
      %26 = arith.addf %23, %25 : vector<2x512xf32>
      %27 = vector.extract_strided_slice %21 {offsets = [0, 0], sizes = [2, 128], strides = [1, 1]} : vector<2x512xf32> to vector<2x128xf32>
      %cst_19 = arith.constant 0.000000e+00 : f32
      %28 = vector.broadcast %cst_19 : f32 to vector<2x128xf32>
      %29 = arith.subf %28, %27 : vector<2x128xf32>
      %30 = math.exp %29 : vector<2x128xf32>
      %cst_20 = arith.constant 1.000000e+00 : f32
      %31 = vector.broadcast %cst_20 : f32 to vector<2x128xf32>
      %32 = arith.addf %31, %30 : vector<2x128xf32>
      %cst_21 = arith.constant 1.000000e+00 : f32
      %33 = vector.broadcast %cst_21 : f32 to vector<2x128xf32>
      %34 = arith.divf %33, %32 : vector<2x128xf32>
      %35 = vector.extract_strided_slice %21 {offsets = [0, 128], sizes = [2, 128], strides = [1, 1]} : vector<2x512xf32> to vector<2x128xf32>
      %cst_22 = arith.constant 0.000000e+00 : f32
      %36 = vector.broadcast %cst_22 : f32 to vector<2x128xf32>
      %37 = arith.subf %36, %35 : vector<2x128xf32>
      %38 = math.exp %37 : vector<2x128xf32>
      %cst_23 = arith.constant 1.000000e+00 : f32
      %39 = vector.broadcast %cst_23 : f32 to vector<2x128xf32>
      %40 = arith.addf %39, %38 : vector<2x128xf32>
      %cst_24 = arith.constant 1.000000e+00 : f32
      %41 = vector.broadcast %cst_24 : f32 to vector<2x128xf32>
      %42 = arith.divf %41, %40 : vector<2x128xf32>
      %43 = vector.extract_strided_slice %21 {offsets = [0, 256], sizes = [2, 128], strides = [1, 1]} : vector<2x512xf32> to vector<2x128xf32>
      %44 = math.tanh %43 : vector<2x128xf32>
      %45 = vector.extract_strided_slice %21 {offsets = [0, 384], sizes = [2, 128], strides = [1, 1]} : vector<2x512xf32> to vector<2x128xf32>
      %cst_25 = arith.constant 0.000000e+00 : f32
      %46 = vector.broadcast %cst_25 : f32 to vector<2x128xf32>
      %47 = arith.subf %46, %45 : vector<2x128xf32>
      %48 = math.exp %47 : vector<2x128xf32>
      %cst_26 = arith.constant 1.000000e+00 : f32
      %49 = vector.broadcast %cst_26 : f32 to vector<2x128xf32>
      %50 = arith.addf %49, %48 : vector<2x128xf32>
      %cst_27 = arith.constant 1.000000e+00 : f32
      %51 = vector.broadcast %cst_27 : f32 to vector<2x128xf32>
      %52 = arith.divf %51, %50 : vector<2x128xf32>
      %53 = arith.mulf %42, %arg16 : vector<2x128xf32>
      %54 = arith.mulf %34, %44 : vector<2x128xf32>
      %55 = arith.addf %53, %54 : vector<2x128xf32>
      %56 = math.tanh %55 : vector<2x128xf32>
      %57 = arith.mulf %52, %56 : vector<2x128xf32>
      %58 = vector.extract_strided_slice %26 {offsets = [0, 0], sizes = [2, 128], strides = [1, 1]} : vector<2x512xf32> to vector<2x128xf32>
      %cst_28 = arith.constant 0.000000e+00 : f32
      %59 = vector.broadcast %cst_28 : f32 to vector<2x128xf32>
      %60 = arith.subf %59, %58 : vector<2x128xf32>
      %61 = math.exp %60 : vector<2x128xf32>
      %cst_29 = arith.constant 1.000000e+00 : f32
      %62 = vector.broadcast %cst_29 : f32 to vector<2x128xf32>
      %63 = arith.addf %62, %61 : vector<2x128xf32>
      %cst_30 = arith.constant 1.000000e+00 : f32
      %64 = vector.broadcast %cst_30 : f32 to vector<2x128xf32>
      %65 = arith.divf %64, %63 : vector<2x128xf32>
      %66 = vector.extract_strided_slice %26 {offsets = [0, 128], sizes = [2, 128], strides = [1, 1]} : vector<2x512xf32> to vector<2x128xf32>
      %cst_31 = arith.constant 0.000000e+00 : f32
      %67 = vector.broadcast %cst_31 : f32 to vector<2x128xf32>
      %68 = arith.subf %67, %66 : vector<2x128xf32>
      %69 = math.exp %68 : vector<2x128xf32>
      %cst_32 = arith.constant 1.000000e+00 : f32
      %70 = vector.broadcast %cst_32 : f32 to vector<2x128xf32>
      %71 = arith.addf %70, %69 : vector<2x128xf32>
      %cst_33 = arith.constant 1.000000e+00 : f32
      %72 = vector.broadcast %cst_33 : f32 to vector<2x128xf32>
      %73 = arith.divf %72, %71 : vector<2x128xf32>
      %74 = vector.extract_strided_slice %26 {offsets = [0, 256], sizes = [2, 128], strides = [1, 1]} : vector<2x512xf32> to vector<2x128xf32>
      %75 = math.tanh %74 : vector<2x128xf32>
      %76 = vector.extract_strided_slice %26 {offsets = [0, 384], sizes = [2, 128], strides = [1, 1]} : vector<2x512xf32> to vector<2x128xf32>
      %cst_34 = arith.constant 0.000000e+00 : f32
      %77 = vector.broadcast %cst_34 : f32 to vector<2x128xf32>
      %78 = arith.subf %77, %76 : vector<2x128xf32>
      %79 = math.exp %78 : vector<2x128xf32>
      %cst_35 = arith.constant 1.000000e+00 : f32
      %80 = vector.broadcast %cst_35 : f32 to vector<2x128xf32>
      %81 = arith.addf %80, %79 : vector<2x128xf32>
      %cst_36 = arith.constant 1.000000e+00 : f32
      %82 = vector.broadcast %cst_36 : f32 to vector<2x128xf32>
      %83 = arith.divf %82, %81 : vector<2x128xf32>
      %84 = arith.mulf %73, %arg18 : vector<2x128xf32>
      %85 = arith.mulf %65, %75 : vector<2x128xf32>
      %86 = arith.addf %84, %85 : vector<2x128xf32>
      %87 = math.tanh %86 : vector<2x128xf32>
      %88 = arith.mulf %83, %87 : vector<2x128xf32>
      %89 = arith.truncf %57 : vector<2x128xf32> to vector<2x128xbf16>
      %90 = arith.index_cast %arg14 : i32 to index
      %c0_37 = arith.constant 0 : index
      %c0_38 = arith.constant 0 : index
      %91 = vector.load %arg12[%90, %c0_37, %c0_38] : memref<32x2x128xbf16, #tpu.memory_space<vmem>>, vector<1x2x128xbf16>
      %92 = vector.shape_cast %91 : vector<1x2x128xbf16> to vector<2x128xbf16>
      %93 = vector.shape_cast %89 : vector<2x128xbf16> to vector<1x2x128xbf16>
      tpu.vector_store %arg12[%90, %c0_37, %c0_38], %93 {strides = array<i32>} : memref<32x2x128xbf16, #tpu.memory_space<vmem>>, vector<1x2x128xbf16>,
      %94 = arith.truncf %88 : vector<2x128xf32> to vector<2x128xbf16>
      %95 = arith.index_cast %6 : i32 to index
      %c0_39 = arith.constant 0 : index
      %c0_40 = arith.constant 0 : index
      %96 = vector.load %arg13[%95, %c0_39, %c0_40] : memref<32x2x128xbf16, #tpu.memory_space<vmem>>, vector<1x2x128xbf16>
      %97 = vector.shape_cast %96 : vector<1x2x128xbf16> to vector<2x128xbf16>
      %98 = vector.shape_cast %94 : vector<2x128xbf16> to vector<1x2x128xbf16>
      tpu.vector_store %arg13[%95, %c0_39, %c0_40], %98 {strides = array<i32>} : memref<32x2x128xbf16, #tpu.memory_space<vmem>>, vector<1x2x128xbf16>,
      scf.yield %57, %55, %88, %86 : vector<2x128xf32>, vector<2x128xf32>, vector<2x128xf32>, vector<2x128xf32>
    }
    %c32_i32_0 = arith.constant 32 : i32
    %cst_1 = arith.constant 0.000000e+00 : f32
    %3 = vector.broadcast %cst_1 : f32 to vector<2x128xf32>
    %c0_i32_2 = arith.constant 0 : i32
    %c32_i32_3 = arith.constant 32 : i32
    %4 = arith.addi %c0_i32_2, %c32_i32_3 : i32
    %c1_i32_4 = arith.constant 1 : i32
    %5:4 = scf.for %arg14 = %c0_i32_2 to %4 step %c1_i32_4 iter_args(%arg15 = %3, %arg16 = %3, %arg17 = %3, %arg18 = %3) -> (vector<2x128xf32>, vector<2x128xf32>, vector<2x128xf32>, vector<2x128xf32>)  : i32 {
      %c31_i32 = arith.constant 31 : i32
      %6 = arith.subi %c31_i32, %arg14 : i32
      %7 = arith.index_cast %arg14 : i32 to index
      %c0 = arith.constant 0 : index
      %c0_6 = arith.constant 0 : index
      %8 = vector.load %arg12[%7, %c0, %c0_6] : memref<32x2x128xbf16, #tpu.memory_space<vmem>>, vector<1x2x128xbf16>
      %9 = vector.shape_cast %8 : vector<1x2x128xbf16> to vector<2x128xbf16>
      %10 = arith.index_cast %arg14 : i32 to index
      %c0_7 = arith.constant 0 : index
      %c0_8 = arith.constant 0 : index
      %11 = vector.load %arg13[%10, %c0_7, %c0_8] : memref<32x2x128xbf16, #tpu.memory_space<vmem>>, vector<1x2x128xbf16>
      %12 = vector.shape_cast %11 : vector<1x2x128xbf16> to vector<2x128xbf16>
      %13 = tpu.concatenate %9, %12 in 1 : vector<2x128xbf16>, vector<2x128xbf16> -> vector<2x256xbf16>
      %14 = arith.truncf %arg15 : vector<2x128xf32> to vector<2x128xbf16>
      %15 = tpu.concatenate %13, %14 in 1 : vector<2x256xbf16>, vector<2x128xbf16> -> vector<2x384xbf16>
      %16 = arith.index_cast %6 : i32 to index
      %c0_9 = arith.constant 0 : index
      %c0_10 = arith.constant 0 : index
      %17 = vector.load %arg12[%16, %c0_9, %c0_10] : memref<32x2x128xbf16, #tpu.memory_space<vmem>>, vector<1x2x128xbf16>
      %18 = vector.shape_cast %17 : vector<1x2x128xbf16> to vector<2x128xbf16>
      %19 = arith.index_cast %6 : i32 to index
      %c0_11 = arith.constant 0 : index
      %c0_12 = arith.constant 0 : index
      %20 = vector.load %arg13[%19, %c0_11, %c0_12] : memref<32x2x128xbf16, #tpu.memory_space<vmem>>, vector<1x2x128xbf16>
      %21 = vector.shape_cast %20 : vector<1x2x128xbf16> to vector<2x128xbf16>
      %22 = tpu.concatenate %18, %21 in 1 : vector<2x128xbf16>, vector<2x128xbf16> -> vector<2x256xbf16>
      %23 = arith.truncf %arg17 : vector<2x128xf32> to vector<2x128xbf16>
      %24 = tpu.concatenate %22, %23 in 1 : vector<2x256xbf16>, vector<2x128xbf16> -> vector<2x384xbf16>
      %c0_13 = arith.constant 0 : index
      %c0_14 = arith.constant 0 : index
      %25 = vector.load %arg6[%c0_13, %c0_14] : memref<384x512xbf16, #tpu.memory_space<vmem>>, vector<384x512xbf16>
      %cst_15 = arith.constant dense<0.000000e+00> : vector<2x512xf32>
      %26 = tpu.matmul %15, %25, %cst_15 {dimension_numbers = #tpu.dot_dimension_numbers<[1], [0], [0], [1], [0, 0, 1, 1], [], []>} : vector<2x384xbf16>, vector<384x512xbf16>, vector<2x512xf32> -> vector<2x512xf32>
      %c0_16 = arith.constant 0 : index
      %c0_17 = arith.constant 0 : index
      %27 = vector.load %arg7[%c0_16, %c0_17] : memref<1x512xf32, #tpu.memory_space<vmem>>, vector<1x512xf32>
      %28 = vector.broadcast %27 : vector<1x512xf32> to vector<2x512xf32>
      %29 = arith.addf %26, %28 : vector<2x512xf32>
      %c0_18 = arith.constant 0 : index
      %c0_19 = arith.constant 0 : index
      %30 = vector.load %arg8[%c0_18, %c0_19] : memref<384x512xbf16, #tpu.memory_space<vmem>>, vector<384x512xbf16>
      %cst_20 = arith.constant dense<0.000000e+00> : vector<2x512xf32>
      %31 = tpu.matmul %24, %30, %cst_20 {dimension_numbers = #tpu.dot_dimension_numbers<[1], [0], [0], [1], [0, 0, 1, 1], [], []>} : vector<2x384xbf16>, vector<384x512xbf16>, vector<2x512xf32> -> vector<2x512xf32>
      %c0_21 = arith.constant 0 : index
      %c0_22 = arith.constant 0 : index
      %32 = vector.load %arg9[%c0_21, %c0_22] : memref<1x512xf32, #tpu.memory_space<vmem>>, vector<1x512xf32>
      %33 = vector.broadcast %32 : vector<1x512xf32> to vector<2x512xf32>
      %34 = arith.addf %31, %33 : vector<2x512xf32>
      %35 = vector.extract_strided_slice %29 {offsets = [0, 0], sizes = [2, 128], strides = [1, 1]} : vector<2x512xf32> to vector<2x128xf32>
      %cst_23 = arith.constant 0.000000e+00 : f32
      %36 = vector.broadcast %cst_23 : f32 to vector<2x128xf32>
      %37 = arith.subf %36, %35 : vector<2x128xf32>
      %38 = math.exp %37 : vector<2x128xf32>
      %cst_24 = arith.constant 1.000000e+00 : f32
      %39 = vector.broadcast %cst_24 : f32 to vector<2x128xf32>
      %40 = arith.addf %39, %38 : vector<2x128xf32>
      %cst_25 = arith.constant 1.000000e+00 : f32
      %41 = vector.broadcast %cst_25 : f32 to vector<2x128xf32>
      %42 = arith.divf %41, %40 : vector<2x128xf32>
      %43 = vector.extract_strided_slice %29 {offsets = [0, 128], sizes = [2, 128], strides = [1, 1]} : vector<2x512xf32> to vector<2x128xf32>
      %cst_26 = arith.constant 0.000000e+00 : f32
      %44 = vector.broadcast %cst_26 : f32 to vector<2x128xf32>
      %45 = arith.subf %44, %43 : vector<2x128xf32>
      %46 = math.exp %45 : vector<2x128xf32>
      %cst_27 = arith.constant 1.000000e+00 : f32
      %47 = vector.broadcast %cst_27 : f32 to vector<2x128xf32>
      %48 = arith.addf %47, %46 : vector<2x128xf32>
      %cst_28 = arith.constant 1.000000e+00 : f32
      %49 = vector.broadcast %cst_28 : f32 to vector<2x128xf32>
      %50 = arith.divf %49, %48 : vector<2x128xf32>
      %51 = vector.extract_strided_slice %29 {offsets = [0, 256], sizes = [2, 128], strides = [1, 1]} : vector<2x512xf32> to vector<2x128xf32>
      %52 = math.tanh %51 : vector<2x128xf32>
      %53 = vector.extract_strided_slice %29 {offsets = [0, 384], sizes = [2, 128], strides = [1, 1]} : vector<2x512xf32> to vector<2x128xf32>
      %cst_29 = arith.constant 0.000000e+00 : f32
      %54 = vector.broadcast %cst_29 : f32 to vector<2x128xf32>
      %55 = arith.subf %54, %53 : vector<2x128xf32>
      %56 = math.exp %55 : vector<2x128xf32>
      %cst_30 = arith.constant 1.000000e+00 : f32
      %57 = vector.broadcast %cst_30 : f32 to vector<2x128xf32>
      %58 = arith.addf %57, %56 : vector<2x128xf32>
      %cst_31 = arith.constant 1.000000e+00 : f32
      %59 = vector.broadcast %cst_31 : f32 to vector<2x128xf32>
      %60 = arith.divf %59, %58 : vector<2x128xf32>
      %61 = arith.mulf %50, %arg16 : vector<2x128xf32>
      %62 = arith.mulf %42, %52 : vector<2x128xf32>
      %63 = arith.addf %61, %62 : vector<2x128xf32>
      %64 = math.tanh %63 : vector<2x128xf32>
      %65 = arith.mulf %60, %64 : vector<2x128xf32>
      %66 = vector.extract_strided_slice %34 {offsets = [0, 0], sizes = [2, 128], strides = [1, 1]} : vector<2x512xf32> to vector<2x128xf32>
      %cst_32 = arith.constant 0.000000e+00 : f32
      %67 = vector.broadcast %cst_32 : f32 to vector<2x128xf32>
      %68 = arith.subf %67, %66 : vector<2x128xf32>
      %69 = math.exp %68 : vector<2x128xf32>
      %cst_33 = arith.constant 1.000000e+00 : f32
      %70 = vector.broadcast %cst_33 : f32 to vector<2x128xf32>
      %71 = arith.addf %70, %69 : vector<2x128xf32>
      %cst_34 = arith.constant 1.000000e+00 : f32
      %72 = vector.broadcast %cst_34 : f32 to vector<2x128xf32>
      %73 = arith.divf %72, %71 : vector<2x128xf32>
      %74 = vector.extract_strided_slice %34 {offsets = [0, 128], sizes = [2, 128], strides = [1, 1]} : vector<2x512xf32> to vector<2x128xf32>
      %cst_35 = arith.constant 0.000000e+00 : f32
      %75 = vector.broadcast %cst_35 : f32 to vector<2x128xf32>
      %76 = arith.subf %75, %74 : vector<2x128xf32>
      %77 = math.exp %76 : vector<2x128xf32>
      %cst_36 = arith.constant 1.000000e+00 : f32
      %78 = vector.broadcast %cst_36 : f32 to vector<2x128xf32>
      %79 = arith.addf %78, %77 : vector<2x128xf32>
      %cst_37 = arith.constant 1.000000e+00 : f32
      %80 = vector.broadcast %cst_37 : f32 to vector<2x128xf32>
      %81 = arith.divf %80, %79 : vector<2x128xf32>
      %82 = vector.extract_strided_slice %34 {offsets = [0, 256], sizes = [2, 128], strides = [1, 1]} : vector<2x512xf32> to vector<2x128xf32>
      %83 = math.tanh %82 : vector<2x128xf32>
      %84 = vector.extract_strided_slice %34 {offsets = [0, 384], sizes = [2, 128], strides = [1, 1]} : vector<2x512xf32> to vector<2x128xf32>
      %cst_38 = arith.constant 0.000000e+00 : f32
      %85 = vector.broadcast %cst_38 : f32 to vector<2x128xf32>
      %86 = arith.subf %85, %84 : vector<2x128xf32>
      %87 = math.exp %86 : vector<2x128xf32>
      %cst_39 = arith.constant 1.000000e+00 : f32
      %88 = vector.broadcast %cst_39 : f32 to vector<2x128xf32>
      %89 = arith.addf %88, %87 : vector<2x128xf32>
      %cst_40 = arith.constant 1.000000e+00 : f32
      %90 = vector.broadcast %cst_40 : f32 to vector<2x128xf32>
      %91 = arith.divf %90, %89 : vector<2x128xf32>
      %92 = arith.mulf %81, %arg18 : vector<2x128xf32>
      %93 = arith.mulf %73, %83 : vector<2x128xf32>
      %94 = arith.addf %92, %93 : vector<2x128xf32>
      %95 = math.tanh %94 : vector<2x128xf32>
      %96 = arith.mulf %91, %95 : vector<2x128xf32>
      %97 = arith.index_cast %arg14 : i32 to index
      %c0_41 = arith.constant 0 : index
      %c0_42 = arith.constant 0 : index
      %98 = vector.load %arg10[%97, %c0_41, %c0_42] : memref<32x2x128xf32, #tpu.memory_space<vmem>>, vector<1x2x128xf32>
      %99 = vector.shape_cast %98 : vector<1x2x128xf32> to vector<2x128xf32>
      %100 = vector.shape_cast %65 : vector<2x128xf32> to vector<1x2x128xf32>
      tpu.vector_store %arg10[%97, %c0_41, %c0_42], %100 {strides = array<i32>} : memref<32x2x128xf32, #tpu.memory_space<vmem>>, vector<1x2x128xf32>,
      %101 = arith.index_cast %6 : i32 to index
      %c0_43 = arith.constant 0 : index
      %c0_44 = arith.constant 0 : index
      %102 = vector.load %arg11[%101, %c0_43, %c0_44] : memref<32x2x128xf32, #tpu.memory_space<vmem>>, vector<1x2x128xf32>
      %103 = vector.shape_cast %102 : vector<1x2x128xf32> to vector<2x128xf32>
      %104 = vector.shape_cast %96 : vector<2x128xf32> to vector<1x2x128xf32>
      tpu.vector_store %arg11[%101, %c0_43, %c0_44], %104 {strides = array<i32>} : memref<32x2x128xf32, #tpu.memory_space<vmem>>, vector<1x2x128xf32>,
      scf.yield %65, %63, %96, %94 : vector<2x128xf32>, vector<2x128xf32>, vector<2x128xf32>, vector<2x128xf32>
    }
    %c32_i32_5 = arith.constant 32 : i32
    return
  }
  func.func @transform_0(%arg0: i32) -> (i32, i32, i32) {
    %c0_i32 = arith.constant 0 : i32
    %c0_i32_0 = arith.constant 0 : i32
    %c0_i32_1 = arith.constant 0 : i32
    %c0_i32_2 = arith.constant 0 : i32
    return %c0_i32, %c0_i32_0, %c0_i32_1 : i32, i32, i32
  }
  func.func @transform_1(%arg0: i32) -> (i32, i32) {
    %c0_i32 = arith.constant 0 : i32
    %c0_i32_0 = arith.constant 0 : i32
    %c0_i32_1 = arith.constant 0 : i32
    return %c0_i32, %c0_i32_0 : i32, i32
  }
  func.func @transform_2(%arg0: i32) -> (i32, i32) {
    %c0_i32 = arith.constant 0 : i32
    %c0_i32_0 = arith.constant 0 : i32
    %c0_i32_1 = arith.constant 0 : i32
    return %c0_i32, %c0_i32_0 : i32, i32
  }
  func.func @transform_3(%arg0: i32) -> (i32, i32) {
    %c0_i32 = arith.constant 0 : i32
    %c0_i32_0 = arith.constant 0 : i32
    %c0_i32_1 = arith.constant 0 : i32
    return %c0_i32, %c0_i32_0 : i32, i32
  }
  func.func @transform_4(%arg0: i32) -> (i32, i32) {
    %c0_i32 = arith.constant 0 : i32
    %c0_i32_0 = arith.constant 0 : i32
    %c0_i32_1 = arith.constant 0 : i32
    return %c0_i32, %c0_i32_0 : i32, i32
  }
  func.func @transform_5(%arg0: i32) -> (i32, i32) {
    %c0_i32 = arith.constant 0 : i32
    %c0_i32_0 = arith.constant 0 : i32
    %c0_i32_1 = arith.constant 0 : i32
    return %c0_i32, %c0_i32_0 : i32, i32
  }
  func.func @transform_6(%arg0: i32) -> (i32, i32) {
    %c0_i32 = arith.constant 0 : i32
    %c0_i32_0 = arith.constant 0 : i32
    %c0_i32_1 = arith.constant 0 : i32
    return %c0_i32, %c0_i32_0 : i32, i32
  }
  func.func @transform_7(%arg0: i32) -> (i32, i32) {
    %c0_i32 = arith.constant 0 : i32
    %c0_i32_0 = arith.constant 0 : i32
    %c0_i32_1 = arith.constant 0 : i32
    return %c0_i32, %c0_i32_0 : i32, i32
  }
  func.func @transform_8(%arg0: i32) -> (i32, i32) {
    %c0_i32 = arith.constant 0 : i32
    %c0_i32_0 = arith.constant 0 : i32
    %c0_i32_1 = arith.constant 0 : i32
    return %c0_i32, %c0_i32_0 : i32, i32
  }
  func.func @transform_9(%arg0: i32) -> (i32, i32, i32) {
    %c0_i32 = arith.constant 0 : i32
    %c0_i32_0 = arith.constant 0 : i32
    %c0_i32_1 = arith.constant 0 : i32
    %c0_i32_2 = arith.constant 0 : i32
    return %c0_i32, %c0_i32_0, %c0_i32_1 : i32, i32, i32
  }
  func.func @transform_10(%arg0: i32) -> (i32, i32, i32) {
    %c0_i32 = arith.constant 0 : i32
    %c0_i32_0 = arith.constant 0 : i32
    %c0_i32_1 = arith.constant 0 : i32
    %c0_i32_2 = arith.constant 0 : i32
    return %c0_i32, %c0_i32_0, %c0_i32_1 : i32, i32, i32
  }
}

</mosaic_0001>

<llo_original>
// kernel: bilstm_hidden_forward.1
$region0: #{bilstm_hidden_forward.1}
  #allocation0 [shape = 'u32[]', space=smem, size = 0x4, offset = 0x4, fixed_abs, tag = 'smem constant byte address 0x4 - core index']
  #allocation1 [shape = 'u32[144,128]{1,0:T(1,128)}', space=vmem, size = 0x12000, scoped, tag = 'internal scratch']
  #allocation2 [shape = 'bf16[32,2,128]{2,1,0:T(2,128)(2,1)}', space=vmem, size = 0x4000, scoped, tag = 'scratch operand']
  #allocation3 [shape = 'bf16[32,2,128]{2,1,0:T(2,128)(2,1)}', space=vmem, size = 0x4000, scoped, tag = 'scratch operand']
  %s0 = inlined_call_operand.vmem [shape: bf16[32,2,128], index: 0, kind: input, shape index: {}]
  %s1 = inlined_call_operand.vmem [shape: bf16[256,512], index: 1, kind: input, shape index: {}]
  %s2 = inlined_call_operand.vmem [shape: f32[1,512], index: 2, kind: input, shape index: {}]
  %s3 = inlined_call_operand.vmem [shape: bf16[256,512], index: 3, kind: input, shape index: {}]
  %s4 = inlined_call_operand.vmem [shape: f32[1,512], index: 4, kind: input, shape index: {}]
  %s5 = inlined_call_operand.vmem [shape: bf16[384,512], index: 5, kind: input, shape index: {}]
  %s6 = inlined_call_operand.vmem [shape: f32[1,512], index: 6, kind: input, shape index: {}]
  %s7 = inlined_call_operand.vmem [shape: bf16[384,512], index: 7, kind: input, shape index: {}]
  %s8 = inlined_call_operand.vmem [shape: f32[1,512], index: 8, kind: input, shape index: {}]
  %s9 = inlined_call_operand.vmem [shape: f32[32,2,128], index: 9, kind: output, shape index: {0}]
  %s10 = inlined_call_operand.vmem [shape: f32[32,2,128], index: 10, kind: output, shape index: {1}]
  %11 = xla_tuple %s9, %s10
  %s12 = sld [smem:[#allocation0]]
  $region68: #{bilstm_hidden_forward.1} parent=0
    _
  %s14 = ssub.s32 1, %s12
  %s15 = scalar_select 0, %s14, %s12
  // Predicated region
  $region2: #{bilstm_hidden_forward.1} parent=0 // pred_check
    _
  $region3: #{bilstm_hidden_forward.1} parent=0 // pred_check_branch
    %17 = sbr.rel (0) target = $region5
  $region4: #{bilstm_hidden_forward.1} parent=0 // pred_region
    _
  $region5: #{bilstm_hidden_forward.1} parent=0 // pred_fallthru
    _
  // Predicated region
  $region6: #{bilstm_hidden_forward.1} parent=0 // pred_check
    _
  $region7: #{bilstm_hidden_forward.1} parent=0 // pred_check_branch
    %19 = sbr.rel (0) target = $region9
  $region8: #{bilstm_hidden_forward.1} parent=0 // pred_region
    _
  $region9: #{bilstm_hidden_forward.1} parent=0 // pred_fallthru
    _
  // Predicated region
  $region10: #{bilstm_hidden_forward.1} parent=0 // pred_check
    _
  $region11: #{bilstm_hidden_forward.1} parent=0 // pred_check_branch
    %21 = sbr.rel (0) target = $region13
  $region12: #{bilstm_hidden_forward.1} parent=0 // pred_region
    _
  $region13: #{bilstm_hidden_forward.1} parent=0 // pred_fallthru
    _
  // Predicated region
  $region14: #{bilstm_hidden_forward.1} parent=0 // pred_check
    _
  $region15: #{bilstm_hidden_forward.1} parent=0 // pred_check_branch
    %23 = sbr.rel (0) target = $region17
  $region16: #{bilstm_hidden_forward.1} parent=0 // pred_region
    _
  $region17: #{bilstm_hidden_forward.1} parent=0 // pred_fallthru
    _
  // Predicated region
  $region18: #{bilstm_hidden_forward.1} parent=0 // pred_check
    _
  $region19: #{bilstm_hidden_forward.1} parent=0 // pred_check_branch
    %25 = sbr.rel (0) target = $region21
  $region20: #{bilstm_hidden_forward.1} parent=0 // pred_region
    _
  $region21: #{bilstm_hidden_forward.1} parent=0 // pred_fallthru
    _
  // Predicated region
  $region22: #{bilstm_hidden_forward.1} parent=0 // pred_check
    _
  $region23: #{bilstm_hidden_forward.1} parent=0 // pred_check_branch
    %27 = sbr.rel (0) target = $region25
  $region24: #{bilstm_hidden_forward.1} parent=0 // pred_region
    _
  $region25: #{bilstm_hidden_forward.1} parent=0 // pred_fallthru
    _
  // Predicated region
  $region26: #{bilstm_hidden_forward.1} parent=0 // pred_check
    _
  $region27: #{bilstm_hidden_forward.1} parent=0 // pred_check_branch
    %29 = sbr.rel (0) target = $region29
  $region28: #{bilstm_hidden_forward.1} parent=0 // pred_region
    _
  $region29: #{bilstm_hidden_forward.1} parent=0 // pred_fallthru
    _
  // Predicated region
  $region30: #{bilstm_hidden_forward.1} parent=0 // pred_check
    _
  $region31: #{bilstm_hidden_forward.1} parent=0 // pred_check_branch
    %31 = sbr.rel (0) target = $region33
  $region32: #{bilstm_hidden_forward.1} parent=0 // pred_region
    _
  $region33: #{bilstm_hidden_forward.1} parent=0 // pred_fallthru
    _
  // Predicated region
  $region34: #{bilstm_hidden_forward.1} parent=0 // pred_check
    _
  $region35: #{bilstm_hidden_forward.1} parent=0 // pred_check_branch
    %33 = sbr.rel (0) target = $region37
  $region36: #{bilstm_hidden_forward.1} parent=0 // pred_region
    _
  $region37: #{bilstm_hidden_forward.1} parent=0 // pred_fallthru
    _
  loop: start=0, step=1, limit=32
  $region38: #{bilstm_hidden_forward.1} parent=0 // loop_pre_header
    _
  $region39: #{bilstm_hidden_forward.1} parent=0 // loop_header
    %s36 = sphi 0, %s40
    %p37 = scmp.ge.s32.totalorder %s36, 32
    %v41 = vphi 0.0, %v1051
    %v42 = vphi 0.0, %v1049
    %v43 = vphi 0.0, %v1075
    %v44 = vphi 0.0, %v1073
  $region40: #{bilstm_hidden_forward.1} parent=0 // loop_header_branch
    %39 = sbr.rel (%p37) target = $region44
  $region41: #{bilstm_hidden_forward.1} parent=0 // loop_body
    %s45 = ssub.s32 31, %s36
    %s46 = scalar_lea.vmem %s0, %s36
    %v47 = vld [vmem:[%s46] sm:$0x1]
    %v48 = vpack.c.bf16 %v41, %v41
    %s49 = scalar_lea.vmem %s0, %s45
    %v50 = vld [vmem:[%s49] sm:$0x1]
    %v51 = vpack.c.bf16 %v43, %v43
    %v52 = vld [vmem:[%s1] sm:$0xff]
    %v53 = vld [vmem:[%s1 + $0x8] sm:$0xff]
    %v54 = vld [vmem:[%s1 + $0x10] sm:$0xff]
    %v55 = vld [vmem:[%s1 + $0x18] sm:$0xff]
    %v56 = vld [vmem:[%s1 + $0x20] sm:$0xff]
    %v57 = vld [vmem:[%s1 + $0x28] sm:$0xff]
    %v58 = vld [vmem:[%s1 + $0x30] sm:$0xff]
    %v59 = vld [vmem:[%s1 + $0x38] sm:$0xff]
    %v60 = vld [vmem:[%s1 + $0x40] sm:$0xff]
    %v61 = vld [vmem:[%s1 + $0x48] sm:$0xff]
    %v62 = vld [vmem:[%s1 + $0x50] sm:$0xff]
    %v63 = vld [vmem:[%s1 + $0x58] sm:$0xff]
    %v64 = vld [vmem:[%s1 + $0x60] sm:$0xff]
    %v65 = vld [vmem:[%s1 + $0x68] sm:$0xff]
    %v66 = vld [vmem:[%s1 + $0x70] sm:$0xff]
    %v67 = vld [vmem:[%s1 + $0x78] sm:$0xff]
    %v68 = vld [vmem:[%s1 + $0x80] sm:$0xff]
    %v69 = vld [vmem:[%s1 + $0x88] sm:$0xff]
    %v70 = vld [vmem:[%s1 + $0x90] sm:$0xff]
    %v71 = vld [vmem:[%s1 + $0x98] sm:$0xff]
    %v72 = vld [vmem:[%s1 + $0xa0] sm:$0xff]
    %v73 = vld [vmem:[%s1 + $0xa8] sm:$0xff]
    %v74 = vld [vmem:[%s1 + $0xb0] sm:$0xff]
    %v75 = vld [vmem:[%s1 + $0xb8] sm:$0xff]
    %v76 = vld [vmem:[%s1 + $0xc0] sm:$0xff]
    %v77 = vld [vmem:[%s1 + $0xc8] sm:$0xff]
    %v78 = vld [vmem:[%s1 + $0xd0] sm:$0xff]
    %v79 = vld [vmem:[%s1 + $0xd8] sm:$0xff]
    %v80 = vld [vmem:[%s1 + $0xe0] sm:$0xff]
    %v81 = vld [vmem:[%s1 + $0xe8] sm:$0xff]
    %v82 = vld [vmem:[%s1 + $0xf0] sm:$0xff]
    %v83 = vld [vmem:[%s1 + $0xf8] sm:$0xff]
    %v84 = vld [vmem:[%s1 + $0x100] sm:$0xff]
    %v85 = vld [vmem:[%s1 + $0x108] sm:$0xff]
    %v86 = vld [vmem:[%s1 + $0x110] sm:$0xff]
    %v87 = vld [vmem:[%s1 + $0x118] sm:$0xff]
    %v88 = vld [vmem:[%s1 + $0x120] sm:$0xff]
    %v89 = vld [vmem:[%s1 + $0x128] sm:$0xff]
    %v90 = vld [vmem:[%s1 + $0x130] sm:$0xff]
    %v91 = vld [vmem:[%s1 + $0x138] sm:$0xff]
    %v92 = vld [vmem:[%s1 + $0x140] sm:$0xff]
    %v93 = vld [vmem:[%s1 + $0x148] sm:$0xff]
    %v94 = vld [vmem:[%s1 + $0x150] sm:$0xff]
    %v95 = vld [vmem:[%s1 + $0x158] sm:$0xff]
    %v96 = vld [vmem:[%s1 + $0x160] sm:$0xff]
    %v97 = vld [vmem:[%s1 + $0x168] sm:$0xff]
    %v98 = vld [vmem:[%s1 + $0x170] sm:$0xff]
    %v99 = vld [vmem:[%s1 + $0x178] sm:$0xff]
    %v100 = vld [vmem:[%s1 + $0x180] sm:$0xff]
    %v101 = vld [vmem:[%s1 + $0x188] sm:$0xff]
    %v102 = vld [vmem:[%s1 + $0x190] sm:$0xff]
    %v103 = vld [vmem:[%s1 + $0x198] sm:$0xff]
    %v104 = vld [vmem:[%s1 + $0x1a0] sm:$0xff]
    %v105 = vld [vmem:[%s1 + $0x1a8] sm:$0xff]
    %v106 = vld [vmem:[%s1 + $0x1b0] sm:$0xff]
    %v107 = vld [vmem:[%s1 + $0x1b8] sm:$0xff]
    %v108 = vld [vmem:[%s1 + $0x1c0] sm:$0xff]
    %v109 = vld [vmem:[%s1 + $0x1c8] sm:$0xff]
    %v110 = vld [vmem:[%s1 + $0x1d0] sm:$0xff]
    %v111 = vld [vmem:[%s1 + $0x1d8] sm:$0xff]
    %v112 = vld [vmem:[%s1 + $0x1e0] sm:$0xff]
    %v113 = vld [vmem:[%s1 + $0x1e8] sm:$0xff]
    %v114 = vld [vmem:[%s1 + $0x1f0] sm:$0xff]
    %v115 = vld [vmem:[%s1 + $0x1f8] sm:$0xff]
    %v116 = vld [vmem:[%s2] sm:$0xf]
    %v118 = vlaneseq
    %v119 = vshrl.u32 %v118, 7
    %v120 = vsub.s32 0, %v119
    %v121 = vrot.slane %v116, %v120
    %v122 = vlaneseq
    %v123 = vshrl.u32 %v122, 7
    %v124 = vsub.s32 1, %v123
    %v125 = vrot.slane %v116, %v124
    %v126 = vlaneseq
    %v127 = vshrl.u32 %v126, 7
    %v128 = vsub.s32 2, %v127
    %v129 = vrot.slane %v116, %v128
    %v130 = vlaneseq
    %v131 = vshrl.u32 %v130, 7
    %v132 = vsub.s32 3, %v131
    %v133 = vrot.slane %v116, %v132
    %v202 = vunpack.c.l.b16 %v52
    %v203 = vunpack.c.h.b16 %v52
    %v204 = vunpack.c.l.b16 %v53
    %v205 = vunpack.c.h.b16 %v53
    %v206 = vunpack.c.l.b16 %v54
    %v207 = vunpack.c.h.b16 %v54
    %v208 = vunpack.c.l.b16 %v55
    %v209 = vunpack.c.h.b16 %v55
    %v210 = vunpack.c.l.b16 %v56
    %v211 = vunpack.c.h.b16 %v56
    %v212 = vunpack.c.l.b16 %v57
    %v213 = vunpack.c.h.b16 %v57
    %v214 = vunpack.c.l.b16 %v58
    %v215 = vunpack.c.h.b16 %v58
    %v216 = vunpack.c.l.b16 %v59
    %v217 = vunpack.c.h.b16 %v59
    %v218 = vunpack.c.l.b16 %v60
    %v219 = vunpack.c.h.b16 %v60
    %v220 = vunpack.c.l.b16 %v61
    %v221 = vunpack.c.h.b16 %v61
    %v222 = vunpack.c.l.b16 %v62
    %v223 = vunpack.c.h.b16 %v62
    %v224 = vunpack.c.l.b16 %v63
    %v225 = vunpack.c.h.b16 %v63
    %v226 = vunpack.c.l.b16 %v64
    %v227 = vunpack.c.h.b16 %v64
    %v228 = vunpack.c.l.b16 %v65
    %v229 = vunpack.c.h.b16 %v65
    %v230 = vunpack.c.l.b16 %v66
    %v231 = vunpack.c.h.b16 %v66
    %v232 = vunpack.c.l.b16 %v67
    %v233 = vunpack.c.h.b16 %v67
    %v234 = vunpack.c.l.b16 %v68
    %v235 = vunpack.c.h.b16 %v68
    %v236 = vunpack.c.l.b16 %v69
    %v237 = vunpack.c.h.b16 %v69
    %v238 = vunpack.c.l.b16 %v70
    %v239 = vunpack.c.h.b16 %v70
    %v240 = vunpack.c.l.b16 %v71
    %v241 = vunpack.c.h.b16 %v71
    %v242 = vunpack.c.l.b16 %v72
    %v243 = vunpack.c.h.b16 %v72
    %v244 = vunpack.c.l.b16 %v73
    %v245 = vunpack.c.h.b16 %v73
    %v246 = vunpack.c.l.b16 %v74
    %v247 = vunpack.c.h.b16 %v74
    %v248 = vunpack.c.l.b16 %v75
    %v249 = vunpack.c.h.b16 %v75
    %v250 = vunpack.c.l.b16 %v76
    %v251 = vunpack.c.h.b16 %v76
    %v252 = vunpack.c.l.b16 %v77
    %v253 = vunpack.c.h.b16 %v77
    %v254 = vunpack.c.l.b16 %v78
    %v255 = vunpack.c.h.b16 %v78
    %v256 = vunpack.c.l.b16 %v79
    %v257 = vunpack.c.h.b16 %v79
    %v258 = vunpack.c.l.b16 %v80
    %v259 = vunpack.c.h.b16 %v80
    %v260 = vunpack.c.l.b16 %v81
    %v261 = vunpack.c.h.b16 %v81
    %v262 = vunpack.c.l.b16 %v82
    %v263 = vunpack.c.h.b16 %v82
    %v264 = vunpack.c.l.b16 %v83
    %v265 = vunpack.c.h.b16 %v83
    %v266 = vunpack.c.l.b16 %v84
    %v267 = vunpack.c.h.b16 %v84
    %v268 = vunpack.c.l.b16 %v85
    %v269 = vunpack.c.h.b16 %v85
    %v270 = vunpack.c.l.b16 %v86
    %v271 = vunpack.c.h.b16 %v86
    %v272 = vunpack.c.l.b16 %v87
    %v273 = vunpack.c.h.b16 %v87
    %v274 = vunpack.c.l.b16 %v88
    %v275 = vunpack.c.h.b16 %v88
    %v276 = vunpack.c.l.b16 %v89
    %v277 = vunpack.c.h.b16 %v89
    %v278 = vunpack.c.l.b16 %v90
    %v279 = vunpack.c.h.b16 %v90
    %v280 = vunpack.c.l.b16 %v91
    %v281 = vunpack.c.h.b16 %v91
    %v282 = vunpack.c.l.b16 %v92
    %v283 = vunpack.c.h.b16 %v92
    %v284 = vunpack.c.l.b16 %v93
    %v285 = vunpack.c.h.b16 %v93
    %v286 = vunpack.c.l.b16 %v94
    %v287 = vunpack.c.h.b16 %v94
    %v288 = vunpack.c.l.b16 %v95
    %v289 = vunpack.c.h.b16 %v95
    %v290 = vunpack.c.l.b16 %v96
    %v291 = vunpack.c.h.b16 %v96
    %v292 = vunpack.c.l.b16 %v97
    %v293 = vunpack.c.h.b16 %v97
    %v294 = vunpack.c.l.b16 %v98
    %v295 = vunpack.c.h.b16 %v98
    %v296 = vunpack.c.l.b16 %v99
    %v297 = vunpack.c.h.b16 %v99
    %v298 = vunpack.c.l.b16 %v100
    %v299 = vunpack.c.h.b16 %v100
    %v300 = vunpack.c.l.b16 %v101
    %v301 = vunpack.c.h.b16 %v101
    %v302 = vunpack.c.l.b16 %v102
    %v303 = vunpack.c.h.b16 %v102
    %v304 = vunpack.c.l.b16 %v103
    %v305 = vunpack.c.h.b16 %v103
    %v306 = vunpack.c.l.b16 %v104
    %v307 = vunpack.c.h.b16 %v104
    %v308 = vunpack.c.l.b16 %v105
    %v309 = vunpack.c.h.b16 %v105
    %v310 = vunpack.c.l.b16 %v106
    %v311 = vunpack.c.h.b16 %v106
    %v312 = vunpack.c.l.b16 %v107
    %v313 = vunpack.c.h.b16 %v107
    %v314 = vunpack.c.l.b16 %v108
    %v315 = vunpack.c.h.b16 %v108
    %v316 = vunpack.c.l.b16 %v109
    %v317 = vunpack.c.h.b16 %v109
    %v318 = vunpack.c.l.b16 %v110
    %v319 = vunpack.c.h.b16 %v110
    %v320 = vunpack.c.l.b16 %v111
    %v321 = vunpack.c.h.b16 %v111
    %v322 = vunpack.c.l.b16 %v112
    %v323 = vunpack.c.h.b16 %v112
    %v324 = vunpack.c.l.b16 %v113
    %v325 = vunpack.c.h.b16 %v113
    %v326 = vunpack.c.l.b16 %v114
    %v327 = vunpack.c.h.b16 %v114
    %v328 = vunpack.c.l.b16 %v115
    %v329 = vunpack.c.h.b16 %v115
    %v330 = vpack.c.b16 %v206, %v202
    %v331 = vpack.c.b16 %v207, %v203
    %v332 = vpack.c.b16 %v208, %v204
    %v333 = vpack.c.b16 %v209, %v205
    %v334 = vpack.c.b16 %v214, %v210
    %v335 = vpack.c.b16 %v215, %v211
    %v336 = vpack.c.b16 %v216, %v212
    %v337 = vpack.c.b16 %v217, %v213
    %v338 = vpack.c.b16 %v222, %v218
    %v339 = vpack.c.b16 %v223, %v219
    %v340 = vpack.c.b16 %v224, %v220
    %v341 = vpack.c.b16 %v225, %v221
    %v342 = vpack.c.b16 %v230, %v226
    %v343 = vpack.c.b16 %v231, %v227
    %v344 = vpack.c.b16 %v232, %v228
    %v345 = vpack.c.b16 %v233, %v229
    %v346 = vpack.c.b16 %v238, %v234
    %v347 = vpack.c.b16 %v239, %v235
    %v348 = vpack.c.b16 %v240, %v236
    %v349 = vpack.c.b16 %v241, %v237
    %v350 = vpack.c.b16 %v246, %v242
    %v351 = vpack.c.b16 %v247, %v243
    %v352 = vpack.c.b16 %v248, %v244
    %v353 = vpack.c.b16 %v249, %v245
    %v354 = vpack.c.b16 %v254, %v250
    %v355 = vpack.c.b16 %v255, %v251
    %v356 = vpack.c.b16 %v256, %v252
    %v357 = vpack.c.b16 %v257, %v253
    %v358 = vpack.c.b16 %v262, %v258
    %v359 = vpack.c.b16 %v263, %v259
    %v360 = vpack.c.b16 %v264, %v260
    %v361 = vpack.c.b16 %v265, %v261
    %v362 = vpack.c.b16 %v270, %v266
    %v363 = vpack.c.b16 %v271, %v267
    %v364 = vpack.c.b16 %v272, %v268
    %v365 = vpack.c.b16 %v273, %v269
    %v366 = vpack.c.b16 %v278, %v274
    %v367 = vpack.c.b16 %v279, %v275
    %v368 = vpack.c.b16 %v280, %v276
    %v369 = vpack.c.b16 %v281, %v277
    %v370 = vpack.c.b16 %v286, %v282
    %v371 = vpack.c.b16 %v287, %v283
    %v372 = vpack.c.b16 %v288, %v284
    %v373 = vpack.c.b16 %v289, %v285
    %v374 = vpack.c.b16 %v294, %v290
    %v375 = vpack.c.b16 %v295, %v291
    %v376 = vpack.c.b16 %v296, %v292
    %v377 = vpack.c.b16 %v297, %v293
    %v378 = vpack.c.b16 %v302, %v298
    %v379 = vpack.c.b16 %v303, %v299
    %v380 = vpack.c.b16 %v304, %v300
    %v381 = vpack.c.b16 %v305, %v301
    %v382 = vpack.c.b16 %v310, %v306
    %v383 = vpack.c.b16 %v311, %v307
    %v384 = vpack.c.b16 %v312, %v308
    %v385 = vpack.c.b16 %v313, %v309
    %v386 = vpack.c.b16 %v318, %v314
    %v387 = vpack.c.b16 %v319, %v315
    %v388 = vpack.c.b16 %v320, %v316
    %v389 = vpack.c.b16 %v321, %v317
    %v390 = vpack.c.b16 %v326, %v322
    %v391 = vpack.c.b16 %v327, %v323
    %v392 = vpack.c.b16 %v328, %v324
    %v393 = vpack.c.b16 %v329, %v325
    %458 = vmatprep.subr.bf16.mxu0 %v359
    %459 = vmatpush1.bf16.msra.mxu0 %v358
    %460 = vmatprep.subr.bf16.mxu0 %v355
    %461 = vmatpush1.bf16.msra.mxu0 %v354
    %462 = vmatprep.subr.bf16.mxu0 %v351
    %463 = vmatpush1.bf16.msra.mxu0 %v350
    %464 = vmatprep.subr.bf16.mxu0 %v347
    %465 = vmatpush1.bf16.msra.mxu0 %v346
    %466 = vmatprep.subr.bf16.mxu0 %v343
    %467 = vmatpush1.bf16.msra.mxu0 %v342
    %468 = vmatprep.subr.bf16.mxu0 %v339
    %469 = vmatpush1.bf16.msra.mxu0 %v338
    %470 = vmatprep.subr.bf16.mxu0 %v335
    %471 = vmatpush1.bf16.msra.mxu0 %v334
    %472 = vmatprep.subr.bf16.mxu0 %v331
    %473 = vmatpush1.bf16.msra.mxu0 %v330
    %474 = vmatprep.subr.bf16.mxu0 %v391
    %475 = vmatpush2.bf16.msra.mxu0 %v390
    %476 = vmatprep.subr.bf16.mxu0 %v387
    %477 = vmatpush2.bf16.msra.mxu0 %v386
    %478 = vmatprep.subr.bf16.mxu0 %v383
    %479 = vmatpush2.bf16.msra.mxu0 %v382
    %480 = vmatprep.subr.bf16.mxu0 %v379
    %481 = vmatpush2.bf16.msra.mxu0 %v378
    %482 = vmatprep.subr.bf16.mxu0 %v375
    %483 = vmatpush2.bf16.msra.mxu0 %v374
    %484 = vmatprep.subr.bf16.mxu0 %v371
    %485 = vmatpush2.bf16.msra.mxu0 %v370
    %486 = vmatprep.subr.bf16.mxu0 %v367
    %487 = vmatpush2.bf16.msra.mxu0 %v366
    %488 = vmatprep.subr.bf16.mxu0 %v363
    %489 = vmatpush2.bf16.msra.mxu0 %v362
    %490 = vmatprep.mubr.bf16.mxu0 %v48
    %491 = vmatmul.mubr.bf16.gmra.mxu0 %v47
    %v492 = vpop.f32.mrf.mxu0
    %v493 = vadd.f32 %v121, %v492
    %v494 = vpop.f32.mrf.mxu0
    %v495 = vadd.f32 %v125, %v494
    %v496 = vpop.f32.mrf.mxu0
    %v497 = vpop.f32.mrf.mxu0
    %498 = vdwg.mxu0
    %499 = vmatprep.subr.bf16.mxu0 %v361
    %500 = vmatpush1.bf16.msra.mxu0 %v360
    %501 = vmatprep.subr.bf16.mxu0 %v357
    %502 = vmatpush1.bf16.msra.mxu0 %v356
    %503 = vmatprep.subr.bf16.mxu0 %v353
    %504 = vmatpush1.bf16.msra.mxu0 %v352
    %505 = vmatprep.subr.bf16.mxu0 %v349
    %506 = vmatpush1.bf16.msra.mxu0 %v348
    %507 = vmatprep.subr.bf16.mxu0 %v345
    %508 = vmatpush1.bf16.msra.mxu0 %v344
    %509 = vmatprep.subr.bf16.mxu0 %v341
    %510 = vmatpush1.bf16.msra.mxu0 %v340
    %511 = vmatprep.subr.bf16.mxu0 %v337
    %512 = vmatpush1.bf16.msra.mxu0 %v336
    %513 = vmatprep.subr.bf16.mxu0 %v333
    %514 = vmatpush1.bf16.msra.mxu0 %v332
    %515 = vmatprep.subr.bf16.mxu0 %v393
    %516 = vmatpush2.bf16.msra.mxu0 %v392
    %517 = vmatprep.subr.bf16.mxu0 %v389
    %518 = vmatpush2.bf16.msra.mxu0 %v388
    %519 = vmatprep.subr.bf16.mxu0 %v385
    %520 = vmatpush2.bf16.msra.mxu0 %v384
    %521 = vmatprep.subr.bf16.mxu0 %v381
    %522 = vmatpush2.bf16.msra.mxu0 %v380
    %523 = vmatprep.subr.bf16.mxu0 %v377
    %524 = vmatpush2.bf16.msra.mxu0 %v376
    %525 = vmatprep.subr.bf16.mxu0 %v373
    %526 = vmatpush2.bf16.msra.mxu0 %v372
    %527 = vmatprep.subr.bf16.mxu0 %v369
    %528 = vmatpush2.bf16.msra.mxu0 %v368
    %529 = vmatprep.subr.bf16.mxu0 %v365
    %530 = vmatpush2.bf16.msra.mxu0 %v364
    %531 = vmatprep.mubr.bf16.mxu0 %v48
    %532 = vmatmul.mubr.bf16.gmra.mxu0 %v47
    %v533 = vpop.f32.mrf.mxu0
    %v534 = vadd.f32 %v129, %v533
    %v535 = vpop.f32.mrf.mxu0
    %v536 = vadd.f32 %v133, %v535
    %v537 = vpop.f32.mrf.mxu0
    %v538 = vpop.f32.mrf.mxu0
    %539 = vdwg.mxu0
    %v540 = vld [vmem:[%s3] sm:$0xff]
    %v541 = vld [vmem:[%s3 + $0x8] sm:$0xff]
    %v542 = vld [vmem:[%s3 + $0x10] sm:$0xff]
    %v543 = vld [vmem:[%s3 + $0x18] sm:$0xff]
    %v544 = vld [vmem:[%s3 + $0x20] sm:$0xff]
    %v545 = vld [vmem:[%s3 + $0x28] sm:$0xff]
    %v546 = vld [vmem:[%s3 + $0x30] sm:$0xff]
    %v547 = vld [vmem:[%s3 + $0x38] sm:$0xff]
    %v548 = vld [vmem:[%s3 + $0x40] sm:$0xff]
    %v549 = vld [vmem:[%s3 + $0x48] sm:$0xff]
    %v550 = vld [vmem:[%s3 + $0x50] sm:$0xff]
    %v551 = vld [vmem:[%s3 + $0x58] sm:$0xff]
    %v552 = vld [vmem:[%s3 + $0x60] sm:$0xff]
    %v553 = vld [vmem:[%s3 + $0x68] sm:$0xff]
    %v554 = vld [vmem:[%s3 + $0x70] sm:$0xff]
    %v555 = vld [vmem:[%s3 + $0x78] sm:$0xff]
    %v556 = vld [vmem:[%s3 + $0x80] sm:$0xff]
    %v557 = vld [vmem:[%s3 + $0x88] sm:$0xff]
    %v558 = vld [vmem:[%s3 + $0x90] sm:$0xff]
    %v559 = vld [vmem:[%s3 + $0x98] sm:$0xff]
    %v560 = vld [vmem:[%s3 + $0xa0] sm:$0xff]
    %v561 = vld [vmem:[%s3 + $0xa8] sm:$0xff]
    %v562 = vld [vmem:[%s3 + $0xb0] sm:$0xff]
    %v563 = vld [vmem:[%s3 + $0xb8] sm:$0xff]
    %v564 = vld [vmem:[%s3 + $0xc0] sm:$0xff]
    %v565 = vld [vmem:[%s3 + $0xc8] sm:$0xff]
    %v566 = vld [vmem:[%s3 + $0xd0] sm:$0xff]
    %v567 = vld [vmem:[%s3 + $0xd8] sm:$0xff]
    %v568 = vld [vmem:[%s3 + $0xe0] sm:$0xff]
    %v569 = vld [vmem:[%s3 + $0xe8] sm:$0xff]
    %v570 = vld [vmem:[%s3 + $0xf0] sm:$0xff]
    %v571 = vld [vmem:[%s3 + $0xf8] sm:$0xff]
    %v572 = vld [vmem:[%s3 + $0x100] sm:$0xff]
    %v573 = vld [vmem:[%s3 + $0x108] sm:$0xff]
    %v574 = vld [vmem:[%s3 + $0x110] sm:$0xff]
    %v575 = vld [vmem:[%s3 + $0x118] sm:$0xff]
    %v576 = vld [vmem:[%s3 + $0x120] sm:$0xff]
    %v577 = vld [vmem:[%s3 + $0x128] sm:$0xff]
    %v578 = vld [vmem:[%s3 + $0x130] sm:$0xff]
    %v579 = vld [vmem:[%s3 + $0x138] sm:$0xff]
    %v580 = vld [vmem:[%s3 + $0x140] sm:$0xff]
    %v581 = vld [vmem:[%s3 + $0x148] sm:$0xff]
    %v582 = vld [vmem:[%s3 + $0x150] sm:$0xff]
    %v583 = vld [vmem:[%s3 + $0x158] sm:$0xff]
    %v584 = vld [vmem:[%s3 + $0x160] sm:$0xff]
    %v585 = vld [vmem:[%s3 + $0x168] sm:$0xff]
    %v586 = vld [vmem:[%s3 + $0x170] sm:$0xff]
    %v587 = vld [vmem:[%s3 + $0x178] sm:$0xff]
    %v588 = vld [vmem:[%s3 + $0x180] sm:$0xff]
    %v589 = vld [vmem:[%s3 + $0x188] sm:$0xff]
    %v590 = vld [vmem:[%s3 + $0x190] sm:$0xff]
    %v591 = vld [vmem:[%s3 + $0x198] sm:$0xff]
    %v592 = vld [vmem:[%s3 + $0x1a0] sm:$0xff]
    %v593 = vld [vmem:[%s3 + $0x1a8] sm:$0xff]
    %v594 = vld [vmem:[%s3 + $0x1b0] sm:$0xff]
    %v595 = vld [vmem:[%s3 + $0x1b8] sm:$0xff]
    %v596 = vld [vmem:[%s3 + $0x1c0] sm:$0xff]
    %v597 = vld [vmem:[%s3 + $0x1c8] sm:$0xff]
    %v598 = vld [vmem:[%s3 + $0x1d0] sm:$0xff]
    %v599 = vld [vmem:[%s3 + $0x1d8] sm:$0xff]
    %v600 = vld [vmem:[%s3 + $0x1e0] sm:$0xff]
    %v601 = vld [vmem:[%s3 + $0x1e8] sm:$0xff]
    %v602 = vld [vmem:[%s3 + $0x1f0] sm:$0xff]
    %v603 = vld [vmem:[%s3 + $0x1f8] sm:$0xff]
    %v604 = vld [vmem:[%s4] sm:$0xf]
    %v606 = vlaneseq
    %v607 = vshrl.u32 %v606, 7
    %v608 = vsub.s32 0, %v607
    %v609 = vrot.slane %v604, %v608
    %v610 = vlaneseq
    %v611 = vshrl.u32 %v610, 7
    %v612 = vsub.s32 1, %v611
    %v613 = vrot.slane %v604, %v612
    %v614 = vlaneseq
    %v615 = vshrl.u32 %v614, 7
    %v616 = vsub.s32 2, %v615
    %v617 = vrot.slane %v604, %v616
    %v618 = vlaneseq
    %v619 = vshrl.u32 %v618, 7
    %v620 = vsub.s32 3, %v619
    %v621 = vrot.slane %v604, %v620
    %v690 = vunpack.c.l.b16 %v540
    %v691 = vunpack.c.h.b16 %v540
    %v692 = vunpack.c.l.b16 %v541
    %v693 = vunpack.c.h.b16 %v541
    %v694 = vunpack.c.l.b16 %v542
    %v695 = vunpack.c.h.b16 %v542
    %v696 = vunpack.c.l.b16 %v543
    %v697 = vunpack.c.h.b16 %v543
    %v698 = vunpack.c.l.b16 %v544
    %v699 = vunpack.c.h.b16 %v544
    %v700 = vunpack.c.l.b16 %v545
    %v701 = vunpack.c.h.b16 %v545
    %v702 = vunpack.c.l.b16 %v546
    %v703 = vunpack.c.h.b16 %v546
    %v704 = vunpack.c.l.b16 %v547
    %v705 = vunpack.c.h.b16 %v547
    %v706 = vunpack.c.l.b16 %v548
    %v707 = vunpack.c.h.b16 %v548
    %v708 = vunpack.c.l.b16 %v549
    %v709 = vunpack.c.h.b16 %v549
    %v710 = vunpack.c.l.b16 %v550
    %v711 = vunpack.c.h.b16 %v550
    %v712 = vunpack.c.l.b16 %v551
    %v713 = vunpack.c.h.b16 %v551
    %v714 = vunpack.c.l.b16 %v552
    %v715 = vunpack.c.h.b16 %v552
    %v716 = vunpack.c.l.b16 %v553
    %v717 = vunpack.c.h.b16 %v553
    %v718 = vunpack.c.l.b16 %v554
    %v719 = vunpack.c.h.b16 %v554
    %v720 = vunpack.c.l.b16 %v555
    %v721 = vunpack.c.h.b16 %v555
    %v722 = vunpack.c.l.b16 %v556
    %v723 = vunpack.c.h.b16 %v556
    %v724 = vunpack.c.l.b16 %v557
    %v725 = vunpack.c.h.b16 %v557
    %v726 = vunpack.c.l.b16 %v558
    %v727 = vunpack.c.h.b16 %v558
    %v728 = vunpack.c.l.b16 %v559
    %v729 = vunpack.c.h.b16 %v559
    %v730 = vunpack.c.l.b16 %v560
    %v731 = vunpack.c.h.b16 %v560
    %v732 = vunpack.c.l.b16 %v561
    %v733 = vunpack.c.h.b16 %v561
    %v734 = vunpack.c.l.b16 %v562
    %v735 = vunpack.c.h.b16 %v562
    %v736 = vunpack.c.l.b16 %v563
    %v737 = vunpack.c.h.b16 %v563
    %v738 = vunpack.c.l.b16 %v564
    %v739 = vunpack.c.h.b16 %v564
    %v740 = vunpack.c.l.b16 %v565
    %v741 = vunpack.c.h.b16 %v565
    %v742 = vunpack.c.l.b16 %v566
    %v743 = vunpack.c.h.b16 %v566
    %v744 = vunpack.c.l.b16 %v567
    %v745 = vunpack.c.h.b16 %v567
    %v746 = vunpack.c.l.b16 %v568
    %v747 = vunpack.c.h.b16 %v568
    %v748 = vunpack.c.l.b16 %v569
    %v749 = vunpack.c.h.b16 %v569
    %v750 = vunpack.c.l.b16 %v570
    %v751 = vunpack.c.h.b16 %v570
    %v752 = vunpack.c.l.b16 %v571
    %v753 = vunpack.c.h.b16 %v571
    %v754 = vunpack.c.l.b16 %v572
    %v755 = vunpack.c.h.b16 %v572
    %v756 = vunpack.c.l.b16 %v573
    %v757 = vunpack.c.h.b16 %v573
    %v758 = vunpack.c.l.b16 %v574
    %v759 = vunpack.c.h.b16 %v574
    %v760 = vunpack.c.l.b16 %v575
    %v761 = vunpack.c.h.b16 %v575
    %v762 = vunpack.c.l.b16 %v576
    %v763 = vunpack.c.h.b16 %v576
    %v764 = vunpack.c.l.b16 %v577
    %v765 = vunpack.c.h.b16 %v577
    %v766 = vunpack.c.l.b16 %v578
    %v767 = vunpack.c.h.b16 %v578
    %v768 = vunpack.c.l.b16 %v579
    %v769 = vunpack.c.h.b16 %v579
    %v770 = vunpack.c.l.b16 %v580
    %v771 = vunpack.c.h.b16 %v580
    %v772 = vunpack.c.l.b16 %v581
    %v773 = vunpack.c.h.b16 %v581
    %v774 = vunpack.c.l.b16 %v582
    %v775 = vunpack.c.h.b16 %v582
    %v776 = vunpack.c.l.b16 %v583
    %v777 = vunpack.c.h.b16 %v583
    %v778 = vunpack.c.l.b16 %v584
    %v779 = vunpack.c.h.b16 %v584
    %v780 = vunpack.c.l.b16 %v585
    %v781 = vunpack.c.h.b16 %v585
    %v782 = vunpack.c.l.b16 %v586
    %v783 = vunpack.c.h.b16 %v586
    %v784 = vunpack.c.l.b16 %v587
    %v785 = vunpack.c.h.b16 %v587
    %v786 = vunpack.c.l.b16 %v588
    %v787 = vunpack.c.h.b16 %v588
    %v788 = vunpack.c.l.b16 %v589
    %v789 = vunpack.c.h.b16 %v589
    %v790 = vunpack.c.l.b16 %v590
    %v791 = vunpack.c.h.b16 %v590
    %v792 = vunpack.c.l.b16 %v591
    %v793 = vunpack.c.h.b16 %v591
    %v794 = vunpack.c.l.b16 %v592
    %v795 = vunpack.c.h.b16 %v592
    %v796 = vunpack.c.l.b16 %v593
    %v797 = vunpack.c.h.b16 %v593
    %v798 = vunpack.c.l.b16 %v594
    %v799 = vunpack.c.h.b16 %v594
    %v800 = vunpack.c.l.b16 %v595
    %v801 = vunpack.c.h.b16 %v595
    %v802 = vunpack.c.l.b16 %v596
    %v803 = vunpack.c.h.b16 %v596
    %v804 = vunpack.c.l.b16 %v597
    %v805 = vunpack.c.h.b16 %v597
    %v806 = vunpack.c.l.b16 %v598
    %v807 = vunpack.c.h.b16 %v598
    %v808 = vunpack.c.l.b16 %v599
    %v809 = vunpack.c.h.b16 %v599
    %v810 = vunpack.c.l.b16 %v600
    %v811 = vunpack.c.h.b16 %v600
    %v812 = vunpack.c.l.b16 %v601
    %v813 = vunpack.c.h.b16 %v601
    %v814 = vunpack.c.l.b16 %v602
    %v815 = vunpack.c.h.b16 %v602
    %v816 = vunpack.c.l.b16 %v603
    %v817 = vunpack.c.h.b16 %v603
    %v818 = vpack.c.b16 %v694, %v690
    %v819 = vpack.c.b16 %v695, %v691
    %v820 = vpack.c.b16 %v696, %v692
    %v821 = vpack.c.b16 %v697, %v693
    %v822 = vpack.c.b16 %v702, %v698
    %v823 = vpack.c.b16 %v703, %v699
    %v824 = vpack.c.b16 %v704, %v700
    %v825 = vpack.c.b16 %v705, %v701
    %v826 = vpack.c.b16 %v710, %v706
    %v827 = vpack.c.b16 %v711, %v707
    %v828 = vpack.c.b16 %v712, %v708
    %v829 = vpack.c.b16 %v713, %v709
    %v830 = vpack.c.b16 %v718, %v714
    %v831 = vpack.c.b16 %v719, %v715
    %v832 = vpack.c.b16 %v720, %v716
    %v833 = vpack.c.b16 %v721, %v717
    %v834 = vpack.c.b16 %v726, %v722
    %v835 = vpack.c.b16 %v727, %v723
    %v836 = vpack.c.b16 %v728, %v724
    %v837 = vpack.c.b16 %v729, %v725
    %v838 = vpack.c.b16 %v734, %v730
    %v839 = vpack.c.b16 %v735, %v731
    %v840 = vpack.c.b16 %v736, %v732
    %v841 = vpack.c.b16 %v737, %v733
    %v842 = vpack.c.b16 %v742, %v738
    %v843 = vpack.c.b16 %v743, %v739
    %v844 = vpack.c.b16 %v744, %v740
    %v845 = vpack.c.b16 %v745, %v741
    %v846 = vpack.c.b16 %v750, %v746
    %v847 = vpack.c.b16 %v751, %v747
    %v848 = vpack.c.b16 %v752, %v748
    %v849 = vpack.c.b16 %v753, %v749
    %v850 = vpack.c.b16 %v758, %v754
    %v851 = vpack.c.b16 %v759, %v755
    %v852 = vpack.c.b16 %v760, %v756
    %v853 = vpack.c.b16 %v761, %v757
    %v854 = vpack.c.b16 %v766, %v762
    %v855 = vpack.c.b16 %v767, %v763
    %v856 = vpack.c.b16 %v768, %v764
    %v857 = vpack.c.b16 %v769, %v765
    %v858 = vpack.c.b16 %v774, %v770
    %v859 = vpack.c.b16 %v775, %v771
    %v860 = vpack.c.b16 %v776, %v772
    %v861 = vpack.c.b16 %v777, %v773
    %v862 = vpack.c.b16 %v782, %v778
    %v863 = vpack.c.b16 %v783, %v779
    %v864 = vpack.c.b16 %v784, %v780
    %v865 = vpack.c.b16 %v785, %v781
    %v866 = vpack.c.b16 %v790, %v786
    %v867 = vpack.c.b16 %v791, %v787
    %v868 = vpack.c.b16 %v792, %v788
    %v869 = vpack.c.b16 %v793, %v789
    %v870 = vpack.c.b16 %v798, %v794
    %v871 = vpack.c.b16 %v799, %v795
    %v872 = vpack.c.b16 %v800, %v796
    %v873 = vpack.c.b16 %v801, %v797
    %v874 = vpack.c.b16 %v806, %v802
    %v875 = vpack.c.b16 %v807, %v803
    %v876 = vpack.c.b16 %v808, %v804
    %v877 = vpack.c.b16 %v809, %v805
    %v878 = vpack.c.b16 %v814, %v810
    %v879 = vpack.c.b16 %v815, %v811
    %v880 = vpack.c.b16 %v816, %v812
    %v881 = vpack.c.b16 %v817, %v813
    %946 = vmatprep.subr.bf16.mxu0 %v847
    %947 = vmatpush1.bf16.msra.mxu0 %v846
    %948 = vmatprep.subr.bf16.mxu0 %v843
    %949 = vmatpush1.bf16.msra.mxu0 %v842
    %950 = vmatprep.subr.bf16.mxu0 %v839
    %951 = vmatpush1.bf16.msra.mxu0 %v838
    %952 = vmatprep.subr.bf16.mxu0 %v835
    %953 = vmatpush1.bf16.msra.mxu0 %v834
    %954 = vmatprep.subr.bf16.mxu0 %v831
    %955 = vmatpush1.bf16.msra.mxu0 %v830
    %956 = vmatprep.subr.bf16.mxu0 %v827
    %957 = vmatpush1.bf16.msra.mxu0 %v826
    %958 = vmatprep.subr.bf16.mxu0 %v823
    %959 = vmatpush1.bf16.msra.mxu0 %v822
    %960 = vmatprep.subr.bf16.mxu0 %v819
    %961 = vmatpush1.bf16.msra.mxu0 %v818
    %962 = vmatprep.subr.bf16.mxu0 %v879
    %963 = vmatpush2.bf16.msra.mxu0 %v878
    %964 = vmatprep.subr.bf16.mxu0 %v875
    %965 = vmatpush2.bf16.msra.mxu0 %v874
    %966 = vmatprep.subr.bf16.mxu0 %v871
    %967 = vmatpush2.bf16.msra.mxu0 %v870
    %968 = vmatprep.subr.bf16.mxu0 %v867
    %969 = vmatpush2.bf16.msra.mxu0 %v866
    %970 = vmatprep.subr.bf16.mxu0 %v863
    %971 = vmatpush2.bf16.msra.mxu0 %v862
    %972 = vmatprep.subr.bf16.mxu0 %v859
    %973 = vmatpush2.bf16.msra.mxu0 %v858
    %974 = vmatprep.subr.bf16.mxu0 %v855
    %975 = vmatpush2.bf16.msra.mxu0 %v854
    %976 = vmatprep.subr.bf16.mxu0 %v851
    %977 = vmatpush2.bf16.msra.mxu0 %v850
    %978 = vmatprep.mubr.bf16.mxu0 %v51
    %979 = vmatmul.mubr.bf16.gmra.mxu0 %v50
    %v980 = vpop.f32.mrf.mxu0
    %v981 = vadd.f32 %v609, %v980
    %v982 = vpop.f32.mrf.mxu0
    %v983 = vadd.f32 %v613, %v982
    %v984 = vpop.f32.mrf.mxu0
    %v985 = vpop.f32.mrf.mxu0
    %986 = vdwg.mxu0
    %987 = vmatprep.subr.bf16.mxu0 %v849
    %988 = vmatpush1.bf16.msra.mxu0 %v848
    %989 = vmatprep.subr.bf16.mxu0 %v845
    %990 = vmatpush1.bf16.msra.mxu0 %v844
    %991 = vmatprep.subr.bf16.mxu0 %v841
    %992 = vmatpush1.bf16.msra.mxu0 %v840
    %993 = vmatprep.subr.bf16.mxu0 %v837
    %994 = vmatpush1.bf16.msra.mxu0 %v836
    %995 = vmatprep.subr.bf16.mxu0 %v833
    %996 = vmatpush1.bf16.msra.mxu0 %v832
    %997 = vmatprep.subr.bf16.mxu0 %v829
    %998 = vmatpush1.bf16.msra.mxu0 %v828
    %999 = vmatprep.subr.bf16.mxu0 %v825
    %1000 = vmatpush1.bf16.msra.mxu0 %v824
    %1001 = vmatprep.subr.bf16.mxu0 %v821
    %1002 = vmatpush1.bf16.msra.mxu0 %v820
    %1003 = vmatprep.subr.bf16.mxu0 %v881
    %1004 = vmatpush2.bf16.msra.mxu0 %v880
    %1005 = vmatprep.subr.bf16.mxu0 %v877
    %1006 = vmatpush2.bf16.msra.mxu0 %v876
    %1007 = vmatprep.subr.bf16.mxu0 %v873
    %1008 = vmatpush2.bf16.msra.mxu0 %v872
    %1009 = vmatprep.subr.bf16.mxu0 %v869
    %1010 = vmatpush2.bf16.msra.mxu0 %v868
    %1011 = vmatprep.subr.bf16.mxu0 %v865
    %1012 = vmatpush2.bf16.msra.mxu0 %v864
    %1013 = vmatprep.subr.bf16.mxu0 %v861
    %1014 = vmatpush2.bf16.msra.mxu0 %v860
    %1015 = vmatprep.subr.bf16.mxu0 %v857
    %1016 = vmatpush2.bf16.msra.mxu0 %v856
    %1017 = vmatprep.subr.bf16.mxu0 %v853
    %1018 = vmatpush2.bf16.msra.mxu0 %v852
    %1019 = vmatprep.mubr.bf16.mxu0 %v51
    %1020 = vmatmul.mubr.bf16.gmra.mxu0 %v50
    %v1021 = vpop.f32.mrf.mxu0
    %v1022 = vadd.f32 %v617, %v1021
    %v1023 = vpop.f32.mrf.mxu0
    %v1024 = vadd.f32 %v621, %v1023
    %v1025 = vpop.f32.mrf.mxu0
    %v1026 = vpop.f32.mrf.mxu0
    %1027 = vdwg.mxu0
    %v1028 = vsub.f32 0.0, %v493
    %v1029 = vmul.f32 %v1028, 1.442695
    %v1030 = vpow.pop %v1029
    %v1031 = vadd.f32 %v1030, 1.0
    %v1032 = vrcp.pop %v1031
    %v1033 = vmul.f32 1.0, %v1032
    %v1034 = vsub.f32 0.0, %v495
    %v1035 = vmul.f32 %v1034, 1.442695
    %v1036 = vpow.pop %v1035
    %v1037 = vadd.f32 %v1036, 1.0
    %v1038 = vrcp.pop %v1037
    %v1039 = vmul.f32 1.0, %v1038
    %v1040 = vtanh.pop %v534
    %v1041 = vsub.f32 0.0, %v536
    %v1042 = vmul.f32 %v1041, 1.442695
    %v1043 = vpow.pop %v1042
    %v1044 = vadd.f32 %v1043, 1.0
    %v1045 = vrcp.pop %v1044
    %v1046 = vmul.f32 1.0, %v1045
    %v1047 = vmul.f32 %v1039, %v42
    %v1048 = vmul.f32 %v1033, %v1040
    %v1049 = vadd.f32 %v1047, %v1048
    %v1050 = vtanh.pop %v1049
    %v1051 = vmul.f32 %v1046, %v1050
    %v1052 = vsub.f32 0.0, %v981
    %v1053 = vmul.f32 %v1052, 1.442695
    %v1054 = vpow.pop %v1053
    %v1055 = vadd.f32 %v1054, 1.0
    %v1056 = vrcp.pop %v1055
    %v1057 = vmul.f32 1.0, %v1056
    %v1058 = vsub.f32 0.0, %v983
    %v1059 = vmul.f32 %v1058, 1.442695
    %v1060 = vpow.pop %v1059
    %v1061 = vadd.f32 %v1060, 1.0
    %v1062 = vrcp.pop %v1061
    %v1063 = vmul.f32 1.0, %v1062
    %v1064 = vtanh.pop %v1022
    %v1065 = vsub.f32 0.0, %v1024
    %v1066 = vmul.f32 %v1065, 1.442695
    %v1067 = vpow.pop %v1066
    %v1068 = vadd.f32 %v1067, 1.0
    %v1069 = vrcp.pop %v1068
    %v1070 = vmul.f32 1.0, %v1069
    %v1071 = vmul.f32 %v1063, %v44
    %v1072 = vmul.f32 %v1057, %v1064
    %v1073 = vadd.f32 %v1071, %v1072
    %v1074 = vtanh.pop %v1073
    %v1075 = vmul.f32 %v1070, %v1074
    %v1076 = vpack.c.bf16 %v1051, %v1051
    %s1077 = scalar_lea.vmem [#allocation2], %s36
    %1078 = vst [vmem:[%s1077] sm:$0x1] %v1076
    %v1079 = vpack.c.bf16 %v1075, %v1075
    %s1080 = scalar_lea.vmem [#allocation3], %s45
    %1081 = vst [vmem:[%s1080] sm:$0x1] %v1079
  $region42: #{bilstm_hidden_forward.1} parent=0 // loop_footer
    %s40 = sadd.s32 1, %s36
  $region43: #{bilstm_hidden_forward.1} parent=0 // loop_footer_branch
    %35 = sbr.rel target = $region39
  $region44: #{bilstm_hidden_forward.1} parent=0 // loop_exit
    _
  loop: start=0, step=1, limit=32
  $region45: #{bilstm_hidden_forward.1} parent=0 // loop_pre_header
    _
  $region46: #{bilstm_hidden_forward.1} parent=0 // loop_header
    %s1083 = sphi 0, %s1087
    %p1084 = scmp.ge.s32.totalorder %s1083, 32
    %v1088 = vphi 0.0, %v2650
    %v1089 = vphi 0.0, %v2648
    %v1090 = vphi 0.0, %v2674
    %v1091 = vphi 0.0, %v2672
  $region47: #{bilstm_hidden_forward.1} parent=0 // loop_header_branch
    %1086 = sbr.rel (%p1084) target = $region51
  $region48: #{bilstm_hidden_forward.1} parent=0 // loop_body
    %s1092 = ssub.s32 31, %s1083
    %s1093 = scalar_lea.vmem [#allocation2], %s1083
    %v1094 = vld [vmem:[%s1093] sm:$0x1]
    %s1095 = scalar_lea.vmem [#allocation3], %s1083
    %v1096 = vld [vmem:[%s1095] sm:$0x1]
    %v1097 = vpack.c.bf16 %v1088, %v1088
    %s1098 = scalar_lea.vmem [#allocation2], %s1092
    %v1099 = vld [vmem:[%s1098] sm:$0x1]
    %s1100 = scalar_lea.vmem [#allocation3], %s1092
    %v1101 = vld [vmem:[%s1100] sm:$0x1]
    %v1102 = vpack.c.bf16 %v1090, %v1090
    %v1103 = vld [vmem:[%s5] sm:$0xff]
    %v1104 = vld [vmem:[%s5 + $0x8] sm:$0xff]
    %v1105 = vld [vmem:[%s5 + $0x10] sm:$0xff]
    %v1106 = vld [vmem:[%s5 + $0x18] sm:$0xff]
    %v1107 = vld [vmem:[%s5 + $0x20] sm:$0xff]
    %v1108 = vld [vmem:[%s5 + $0x28] sm:$0xff]
    %v1109 = vld [vmem:[%s5 + $0x30] sm:$0xff]
    %v1110 = vld [vmem:[%s5 + $0x38] sm:$0xff]
    %v1111 = vld [vmem:[%s5 + $0x40] sm:$0xff]
    %v1112 = vld [vmem:[%s5 + $0x48] sm:$0xff]
    %v1113 = vld [vmem:[%s5 + $0x50] sm:$0xff]
    %v1114 = vld [vmem:[%s5 + $0x58] sm:$0xff]
    %v1115 = vld [vmem:[%s5 + $0x60] sm:$0xff]
    %v1116 = vld [vmem:[%s5 + $0x68] sm:$0xff]
    %v1117 = vld [vmem:[%s5 + $0x70] sm:$0xff]
    %v1118 = vld [vmem:[%s5 + $0x78] sm:$0xff]
    %v1119 = vld [vmem:[%s5 + $0x80] sm:$0xff]
    %v1120 = vld [vmem:[%s5 + $0x88] sm:$0xff]
    %v1121 = vld [vmem:[%s5 + $0x90] sm:$0xff]
    %v1122 = vld [vmem:[%s5 + $0x98] sm:$0xff]
    %v1123 = vld [vmem:[%s5 + $0xa0] sm:$0xff]
    %v1124 = vld [vmem:[%s5 + $0xa8] sm:$0xff]
    %v1125 = vld [vmem:[%s5 + $0xb0] sm:$0xff]
    %v1126 = vld [vmem:[%s5 + $0xb8] sm:$0xff]
    %v1127 = vld [vmem:[%s5 + $0xc0] sm:$0xff]
    %v1128 = vld [vmem:[%s5 + $0xc8] sm:$0xff]
    %v1129 = vld [vmem:[%s5 + $0xd0] sm:$0xff]
    %v1130 = vld [vmem:[%s5 + $0xd8] sm:$0xff]
    %v1131 = vld [vmem:[%s5 + $0xe0] sm:$0xff]
    %v1132 = vld [vmem:[%s5 + $0xe8] sm:$0xff]
    %v1133 = vld [vmem:[%s5 + $0xf0] sm:$0xff]
    %v1134 = vld [vmem:[%s5 + $0xf8] sm:$0xff]
    %v1135 = vld [vmem:[%s5 + $0x100] sm:$0xff]
    %v1136 = vld [vmem:[%s5 + $0x108] sm:$0xff]
    %v1137 = vld [vmem:[%s5 + $0x110] sm:$0xff]
    %v1138 = vld [vmem:[%s5 + $0x118] sm:$0xff]
    %v1139 = vld [vmem:[%s5 + $0x120] sm:$0xff]
    %v1140 = vld [vmem:[%s5 + $0x128] sm:$0xff]
    %v1141 = vld [vmem:[%s5 + $0x130] sm:$0xff]
    %v1142 = vld [vmem:[%s5 + $0x138] sm:$0xff]
    %v1143 = vld [vmem:[%s5 + $0x140] sm:$0xff]
    %v1144 = vld [vmem:[%s5 + $0x148] sm:$0xff]
    %v1145 = vld [vmem:[%s5 + $0x150] sm:$0xff]
    %v1146 = vld [vmem:[%s5 + $0x158] sm:$0xff]
    %v1147 = vld [vmem:[%s5 + $0x160] sm:$0xff]
    %v1148 = vld [vmem:[%s5 + $0x168] sm:$0xff]
    %v1149 = vld [vmem:[%s5 + $0x170] sm:$0xff]
    %v1150 = vld [vmem:[%s5 + $0x178] sm:$0xff]
    %v1151 = vld [vmem:[%s5 + $0x180] sm:$0xff]
    %v1152 = vld [vmem:[%s5 + $0x188] sm:$0xff]
    %v1153 = vld [vmem:[%s5 + $0x190] sm:$0xff]
    %v1154 = vld [vmem:[%s5 + $0x198] sm:$0xff]
    %v1155 = vld [vmem:[%s5 + $0x1a0] sm:$0xff]
    %v1156 = vld [vmem:[%s5 + $0x1a8] sm:$0xff]
    %v1157 = vld [vmem:[%s5 + $0x1b0] sm:$0xff]
    %v1158 = vld [vmem:[%s5 + $0x1b8] sm:$0xff]
    %v1159 = vld [vmem:[%s5 + $0x1c0] sm:$0xff]
    %v1160 = vld [vmem:[%s5 + $0x1c8] sm:$0xff]
    %v1161 = vld [vmem:[%s5 + $0x1d0] sm:$0xff]
    %v1162 = vld [vmem:[%s5 + $0x1d8] sm:$0xff]
    %v1163 = vld [vmem:[%s5 + $0x1e0] sm:$0xff]
    %v1164 = vld [vmem:[%s5 + $0x1e8] sm:$0xff]
    %v1165 = vld [vmem:[%s5 + $0x1f0] sm:$0xff]
    %v1166 = vld [vmem:[%s5 + $0x1f8] sm:$0xff]
    %v1167 = vld [vmem:[%s5 + $0x200] sm:$0xff]
    %v1168 = vld [vmem:[%s5 + $0x208] sm:$0xff]
    %v1169 = vld [vmem:[%s5 + $0x210] sm:$0xff]
    %v1170 = vld [vmem:[%s5 + $0x218] sm:$0xff]
    %v1171 = vld [vmem:[%s5 + $0x220] sm:$0xff]
    %v1172 = vld [vmem:[%s5 + $0x228] sm:$0xff]
    %v1173 = vld [vmem:[%s5 + $0x230] sm:$0xff]
    %v1174 = vld [vmem:[%s5 + $0x238] sm:$0xff]
    %v1175 = vld [vmem:[%s5 + $0x240] sm:$0xff]
    %v1176 = vld [vmem:[%s5 + $0x248] sm:$0xff]
    %v1177 = vld [vmem:[%s5 + $0x250] sm:$0xff]
    %v1178 = vld [vmem:[%s5 + $0x258] sm:$0xff]
    %v1179 = vld [vmem:[%s5 + $0x260] sm:$0xff]
    %v1180 = vld [vmem:[%s5 + $0x268] sm:$0xff]
    %v1181 = vld [vmem:[%s5 + $0x270] sm:$0xff]
    %v1182 = vld [vmem:[%s5 + $0x278] sm:$0xff]
    %v1183 = vld [vmem:[%s5 + $0x280] sm:$0xff]
    %v1184 = vld [vmem:[%s5 + $0x288] sm:$0xff]
    %v1185 = vld [vmem:[%s5 + $0x290] sm:$0xff]
    %v1186 = vld [vmem:[%s5 + $0x298] sm:$0xff]
    %v1187 = vld [vmem:[%s5 + $0x2a0] sm:$0xff]
    %v1188 = vld [vmem:[%s5 + $0x2a8] sm:$0xff]
    %v1189 = vld [vmem:[%s5 + $0x2b0] sm:$0xff]
    %v1190 = vld [vmem:[%s5 + $0x2b8] sm:$0xff]
    %v1191 = vld [vmem:[%s5 + $0x2c0] sm:$0xff]
    %v1192 = vld [vmem:[%s5 + $0x2c8] sm:$0xff]
    %v1193 = vld [vmem:[%s5 + $0x2d0] sm:$0xff]
    %v1194 = vld [vmem:[%s5 + $0x2d8] sm:$0xff]
    %v1195 = vld [vmem:[%s5 + $0x2e0] sm:$0xff]
    %v1196 = vld [vmem:[%s5 + $0x2e8] sm:$0xff]
    %v1197 = vld [vmem:[%s5 + $0x2f0] sm:$0xff]
    %v1198 = vld [vmem:[%s5 + $0x2f8] sm:$0xff]
    %v1199 = vld [vmem:[%s6] sm:$0xf]
    %v1201 = vlaneseq
    %v1202 = vshrl.u32 %v1201, 7
    %v1203 = vsub.s32 0, %v1202
    %v1204 = vrot.slane %v1199, %v1203
    %v1205 = vlaneseq
    %v1206 = vshrl.u32 %v1205, 7
    %v1207 = vsub.s32 1, %v1206
    %v1208 = vrot.slane %v1199, %v1207
    %v1209 = vlaneseq
    %v1210 = vshrl.u32 %v1209, 7
    %v1211 = vsub.s32 2, %v1210
    %v1212 = vrot.slane %v1199, %v1211
    %v1213 = vlaneseq
    %v1214 = vshrl.u32 %v1213, 7
    %v1215 = vsub.s32 3, %v1214
    %v1216 = vrot.slane %v1199, %v1215
    %v1317 = vunpack.c.l.b16 %v1103
    %v1318 = vunpack.c.h.b16 %v1103
    %v1319 = vunpack.c.l.b16 %v1104
    %v1320 = vunpack.c.h.b16 %v1104
    %v1321 = vunpack.c.l.b16 %v1105
    %v1322 = vunpack.c.h.b16 %v1105
    %v1323 = vunpack.c.l.b16 %v1106
    %v1324 = vunpack.c.h.b16 %v1106
    %v1325 = vunpack.c.l.b16 %v1107
    %v1326 = vunpack.c.h.b16 %v1107
    %v1327 = vunpack.c.l.b16 %v1108
    %v1328 = vunpack.c.h.b16 %v1108
    %v1329 = vunpack.c.l.b16 %v1109
    %v1330 = vunpack.c.h.b16 %v1109
    %v1331 = vunpack.c.l.b16 %v1110
    %v1332 = vunpack.c.h.b16 %v1110
    %v1333 = vunpack.c.l.b16 %v1111
    %v1334 = vunpack.c.h.b16 %v1111
    %v1335 = vunpack.c.l.b16 %v1112
    %v1336 = vunpack.c.h.b16 %v1112
    %v1337 = vunpack.c.l.b16 %v1113
    %v1338 = vunpack.c.h.b16 %v1113
    %v1339 = vunpack.c.l.b16 %v1114
    %v1340 = vunpack.c.h.b16 %v1114
    %v1341 = vunpack.c.l.b16 %v1115
    %v1342 = vunpack.c.h.b16 %v1115
    %v1343 = vunpack.c.l.b16 %v1116
    %v1344 = vunpack.c.h.b16 %v1116
    %v1345 = vunpack.c.l.b16 %v1117
    %v1346 = vunpack.c.h.b16 %v1117
    %v1347 = vunpack.c.l.b16 %v1118
    %v1348 = vunpack.c.h.b16 %v1118
    %v1349 = vunpack.c.l.b16 %v1119
    %v1350 = vunpack.c.h.b16 %v1119
    %v1351 = vunpack.c.l.b16 %v1120
    %v1352 = vunpack.c.h.b16 %v1120
    %v1353 = vunpack.c.l.b16 %v1121
    %v1354 = vunpack.c.h.b16 %v1121
    %v1355 = vunpack.c.l.b16 %v1122
    %v1356 = vunpack.c.h.b16 %v1122
    %v1357 = vunpack.c.l.b16 %v1123
    %v1358 = vunpack.c.h.b16 %v1123
    %v1359 = vunpack.c.l.b16 %v1124
    %v1360 = vunpack.c.h.b16 %v1124
    %v1361 = vunpack.c.l.b16 %v1125
    %v1362 = vunpack.c.h.b16 %v1125
    %v1363 = vunpack.c.l.b16 %v1126
    %v1364 = vunpack.c.h.b16 %v1126
    %v1365 = vunpack.c.l.b16 %v1127
    %v1366 = vunpack.c.h.b16 %v1127
    %v1367 = vunpack.c.l.b16 %v1128
    %v1368 = vunpack.c.h.b16 %v1128
    %v1369 = vunpack.c.l.b16 %v1129
    %v1370 = vunpack.c.h.b16 %v1129
    %v1371 = vunpack.c.l.b16 %v1130
    %v1372 = vunpack.c.h.b16 %v1130
    %v1373 = vunpack.c.l.b16 %v1131
    %v1374 = vunpack.c.h.b16 %v1131
    %v1375 = vunpack.c.l.b16 %v1132
    %v1376 = vunpack.c.h.b16 %v1132
    %v1377 = vunpack.c.l.b16 %v1133
    %v1378 = vunpack.c.h.b16 %v1133
    %v1379 = vunpack.c.l.b16 %v1134
    %v1380 = vunpack.c.h.b16 %v1134
    %v1381 = vunpack.c.l.b16 %v1135
    %v1382 = vunpack.c.h.b16 %v1135
    %v1383 = vunpack.c.l.b16 %v1136
    %v1384 = vunpack.c.h.b16 %v1136
    %v1385 = vunpack.c.l.b16 %v1137
    %v1386 = vunpack.c.h.b16 %v1137
    %v1387 = vunpack.c.l.b16 %v1138
    %v1388 = vunpack.c.h.b16 %v1138
    %v1389 = vunpack.c.l.b16 %v1139
    %v1390 = vunpack.c.h.b16 %v1139
    %v1391 = vunpack.c.l.b16 %v1140
    %v1392 = vunpack.c.h.b16 %v1140
    %v1393 = vunpack.c.l.b16 %v1141
    %v1394 = vunpack.c.h.b16 %v1141
    %v1395 = vunpack.c.l.b16 %v1142
    %v1396 = vunpack.c.h.b16 %v1142
    %v1397 = vunpack.c.l.b16 %v1143
    %v1398 = vunpack.c.h.b16 %v1143
    %v1399 = vunpack.c.l.b16 %v1144
    %v1400 = vunpack.c.h.b16 %v1144
    %v1401 = vunpack.c.l.b16 %v1145
    %v1402 = vunpack.c.h.b16 %v1145
    %v1403 = vunpack.c.l.b16 %v1146
    %v1404 = vunpack.c.h.b16 %v1146
    %v1405 = vunpack.c.l.b16 %v1147
    %v1406 = vunpack.c.h.b16 %v1147
    %v1407 = vunpack.c.l.b16 %v1148
    %v1408 = vunpack.c.h.b16 %v1148
    %v1409 = vunpack.c.l.b16 %v1149
    %v1410 = vunpack.c.h.b16 %v1149
    %v1411 = vunpack.c.l.b16 %v1150
    %v1412 = vunpack.c.h.b16 %v1150
    %v1413 = vunpack.c.l.b16 %v1151
    %v1414 = vunpack.c.h.b16 %v1151
    %v1415 = vunpack.c.l.b16 %v1152
    %v1416 = vunpack.c.h.b16 %v1152
    %v1417 = vunpack.c.l.b16 %v1153
    %v1418 = vunpack.c.h.b16 %v1153
    %v1419 = vunpack.c.l.b16 %v1154
    %v1420 = vunpack.c.h.b16 %v1154
    %v1421 = vunpack.c.l.b16 %v1155
    %v1422 = vunpack.c.h.b16 %v1155
    %v1423 = vunpack.c.l.b16 %v1156
    %v1424 = vunpack.c.h.b16 %v1156
    %v1425 = vunpack.c.l.b16 %v1157
    %v1426 = vunpack.c.h.b16 %v1157
    %v1427 = vunpack.c.l.b16 %v1158
    %v1428 = vunpack.c.h.b16 %v1158
    %v1429 = vunpack.c.l.b16 %v1159
    %v1430 = vunpack.c.h.b16 %v1159
    %v1431 = vunpack.c.l.b16 %v1160
    %v1432 = vunpack.c.h.b16 %v1160
    %v1433 = vunpack.c.l.b16 %v1161
    %v1434 = vunpack.c.h.b16 %v1161
    %v1435 = vunpack.c.l.b16 %v1162
    %v1436 = vunpack.c.h.b16 %v1162
    %v1437 = vunpack.c.l.b16 %v1163
    %v1438 = vunpack.c.h.b16 %v1163
    %v1439 = vunpack.c.l.b16 %v1164
    %v1440 = vunpack.c.h.b16 %v1164
    %v1441 = vunpack.c.l.b16 %v1165
    %v1442 = vunpack.c.h.b16 %v1165
    %v1443 = vunpack.c.l.b16 %v1166
    %v1444 = vunpack.c.h.b16 %v1166
    %v1445 = vunpack.c.l.b16 %v1167
    %v1446 = vunpack.c.h.b16 %v1167
    %v1447 = vunpack.c.l.b16 %v1168
    %v1448 = vunpack.c.h.b16 %v1168
    %v1449 = vunpack.c.l.b16 %v1169
    %v1450 = vunpack.c.h.b16 %v1169
    %v1451 = vunpack.c.l.b16 %v1170
    %v1452 = vunpack.c.h.b16 %v1170
    %v1453 = vunpack.c.l.b16 %v1171
    %v1454 = vunpack.c.h.b16 %v1171
    %v1455 = vunpack.c.l.b16 %v1172
    %v1456 = vunpack.c.h.b16 %v1172
    %v1457 = vunpack.c.l.b16 %v1173
    %v1458 = vunpack.c.h.b16 %v1173
    %v1459 = vunpack.c.l.b16 %v1174
    %v1460 = vunpack.c.h.b16 %v1174
    %v1461 = vunpack.c.l.b16 %v1175
    %v1462 = vunpack.c.h.b16 %v1175
    %v1463 = vunpack.c.l.b16 %v1176
    %v1464 = vunpack.c.h.b16 %v1176
    %v1465 = vunpack.c.l.b16 %v1177
    %v1466 = vunpack.c.h.b16 %v1177
    %v1467 = vunpack.c.l.b16 %v1178
    %v1468 = vunpack.c.h.b16 %v1178
    %v1469 = vunpack.c.l.b16 %v1179
    %v1470 = vunpack.c.h.b16 %v1179
    %v1471 = vunpack.c.l.b16 %v1180
    %v1472 = vunpack.c.h.b16 %v1180
    %v1473 = vunpack.c.l.b16 %v1181
    %v1474 = vunpack.c.h.b16 %v1181
    %v1475 = vunpack.c.l.b16 %v1182
    %v1476 = vunpack.c.h.b16 %v1182
    %v1477 = vunpack.c.l.b16 %v1183
    %v1478 = vunpack.c.h.b16 %v1183
    %v1479 = vunpack.c.l.b16 %v1184
    %v1480 = vunpack.c.h.b16 %v1184
    %v1481 = vunpack.c.l.b16 %v1185
    %v1482 = vunpack.c.h.b16 %v1185
    %v1483 = vunpack.c.l.b16 %v1186
    %v1484 = vunpack.c.h.b16 %v1186
    %v1485 = vunpack.c.l.b16 %v1187
    %v1486 = vunpack.c.h.b16 %v1187
    %v1487 = vunpack.c.l.b16 %v1188
    %v1488 = vunpack.c.h.b16 %v1188
    %v1489 = vunpack.c.l.b16 %v1189
    %v1490 = vunpack.c.h.b16 %v1189
    %v1491 = vunpack.c.l.b16 %v1190
    %v1492 = vunpack.c.h.b16 %v1190
    %v1493 = vunpack.c.l.b16 %v1191
    %v1494 = vunpack.c.h.b16 %v1191
    %v1495 = vunpack.c.l.b16 %v1192
    %v1496 = vunpack.c.h.b16 %v1192
    %v1497 = vunpack.c.l.b16 %v1193
    %v1498 = vunpack.c.h.b16 %v1193
    %v1499 = vunpack.c.l.b16 %v1194
    %v1500 = vunpack.c.h.b16 %v1194
    %v1501 = vunpack.c.l.b16 %v1195
    %v1502 = vunpack.c.h.b16 %v1195
    %v1503 = vunpack.c.l.b16 %v1196
    %v1504 = vunpack.c.h.b16 %v1196
    %v1505 = vunpack.c.l.b16 %v1197
    %v1506 = vunpack.c.h.b16 %v1197
    %v1507 = vunpack.c.l.b16 %v1198
    %v1508 = vunpack.c.h.b16 %v1198
    %v1509 = vpack.c.b16 %v1321, %v1317
    %v1510 = vpack.c.b16 %v1322, %v1318
    %v1511 = vpack.c.b16 %v1323, %v1319
    %v1512 = vpack.c.b16 %v1324, %v1320
    %v1513 = vpack.c.b16 %v1329, %v1325
    %v1514 = vpack.c.b16 %v1330, %v1326
    %v1515 = vpack.c.b16 %v1331, %v1327
    %v1516 = vpack.c.b16 %v1332, %v1328
    %v1517 = vpack.c.b16 %v1337, %v1333
    %v1518 = vpack.c.b16 %v1338, %v1334
    %v1519 = vpack.c.b16 %v1339, %v1335
    %v1520 = vpack.c.b16 %v1340, %v1336
    %v1521 = vpack.c.b16 %v1345, %v1341
    %v1522 = vpack.c.b16 %v1346, %v1342
    %v1523 = vpack.c.b16 %v1347, %v1343
    %v1524 = vpack.c.b16 %v1348, %v1344
    %v1525 = vpack.c.b16 %v1353, %v1349
    %v1526 = vpack.c.b16 %v1354, %v1350
    %v1527 = vpack.c.b16 %v1355, %v1351
    %v1528 = vpack.c.b16 %v1356, %v1352
    %v1529 = vpack.c.b16 %v1361, %v1357
    %v1530 = vpack.c.b16 %v1362, %v1358
    %v1531 = vpack.c.b16 %v1363, %v1359
    %v1532 = vpack.c.b16 %v1364, %v1360
    %v1533 = vpack.c.b16 %v1369, %v1365
    %v1534 = vpack.c.b16 %v1370, %v1366
    %v1535 = vpack.c.b16 %v1371, %v1367
    %v1536 = vpack.c.b16 %v1372, %v1368
    %v1537 = vpack.c.b16 %v1377, %v1373
    %v1538 = vpack.c.b16 %v1378, %v1374
    %v1539 = vpack.c.b16 %v1379, %v1375
    %v1540 = vpack.c.b16 %v1380, %v1376
    %v1541 = vpack.c.b16 %v1385, %v1381
    %v1542 = vpack.c.b16 %v1386, %v1382
    %v1543 = vpack.c.b16 %v1387, %v1383
    %v1544 = vpack.c.b16 %v1388, %v1384
    %v1545 = vpack.c.b16 %v1393, %v1389
    %v1546 = vpack.c.b16 %v1394, %v1390
    %v1547 = vpack.c.b16 %v1395, %v1391
    %v1548 = vpack.c.b16 %v1396, %v1392
    %v1549 = vpack.c.b16 %v1401, %v1397
    %v1550 = vpack.c.b16 %v1402, %v1398
    %v1551 = vpack.c.b16 %v1403, %v1399
    %v1552 = vpack.c.b16 %v1404, %v1400
    %v1553 = vpack.c.b16 %v1409, %v1405
    %v1554 = vpack.c.b16 %v1410, %v1406
    %v1555 = vpack.c.b16 %v1411, %v1407
    %v1556 = vpack.c.b16 %v1412, %v1408
    %v1557 = vpack.c.b16 %v1417, %v1413
    %v1558 = vpack.c.b16 %v1418, %v1414
    %v1559 = vpack.c.b16 %v1419, %v1415
    %v1560 = vpack.c.b16 %v1420, %v1416
    %v1561 = vpack.c.b16 %v1425, %v1421
    %v1562 = vpack.c.b16 %v1426, %v1422
    %v1563 = vpack.c.b16 %v1427, %v1423
    %v1564 = vpack.c.b16 %v1428, %v1424
    %v1565 = vpack.c.b16 %v1433, %v1429
    %v1566 = vpack.c.b16 %v1434, %v1430
    %v1567 = vpack.c.b16 %v1435, %v1431
    %v1568 = vpack.c.b16 %v1436, %v1432
    %v1569 = vpack.c.b16 %v1441, %v1437
    %v1570 = vpack.c.b16 %v1442, %v1438
    %v1571 = vpack.c.b16 %v1443, %v1439
    %v1572 = vpack.c.b16 %v1444, %v1440
    %v1573 = vpack.c.b16 %v1449, %v1445
    %v1574 = vpack.c.b16 %v1450, %v1446
    %v1575 = vpack.c.b16 %v1451, %v1447
    %v1576 = vpack.c.b16 %v1452, %v1448
    %v1577 = vpack.c.b16 %v1457, %v1453
    %v1578 = vpack.c.b16 %v1458, %v1454
    %v1579 = vpack.c.b16 %v1459, %v1455
    %v1580 = vpack.c.b16 %v1460, %v1456
    %v1581 = vpack.c.b16 %v1465, %v1461
    %v1582 = vpack.c.b16 %v1466, %v1462
    %v1583 = vpack.c.b16 %v1467, %v1463
    %v1584 = vpack.c.b16 %v1468, %v1464
    %v1585 = vpack.c.b16 %v1473, %v1469
    %v1586 = vpack.c.b16 %v1474, %v1470
    %v1587 = vpack.c.b16 %v1475, %v1471
    %v1588 = vpack.c.b16 %v1476, %v1472
    %v1589 = vpack.c.b16 %v1481, %v1477
    %v1590 = vpack.c.b16 %v1482, %v1478
    %v1591 = vpack.c.b16 %v1483, %v1479
    %v1592 = vpack.c.b16 %v1484, %v1480
    %v1593 = vpack.c.b16 %v1489, %v1485
    %v1594 = vpack.c.b16 %v1490, %v1486
    %v1595 = vpack.c.b16 %v1491, %v1487
    %v1596 = vpack.c.b16 %v1492, %v1488
    %v1597 = vpack.c.b16 %v1497, %v1493
    %v1598 = vpack.c.b16 %v1498, %v1494
    %v1599 = vpack.c.b16 %v1499, %v1495
    %v1600 = vpack.c.b16 %v1500, %v1496
    %v1601 = vpack.c.b16 %v1505, %v1501
    %v1602 = vpack.c.b16 %v1506, %v1502
    %v1603 = vpack.c.b16 %v1507, %v1503
    %v1604 = vpack.c.b16 %v1508, %v1504
    %1701 = vmatprep.subr.bf16.mxu0 %v1538
    %1702 = vmatpush1.bf16.msra.mxu0 %v1537
    %1703 = vmatprep.subr.bf16.mxu0 %v1534
    %1704 = vmatpush1.bf16.msra.mxu0 %v1533
    %1705 = vmatprep.subr.bf16.mxu0 %v1530
    %1706 = vmatpush1.bf16.msra.mxu0 %v1529
    %1707 = vmatprep.subr.bf16.mxu0 %v1526
    %1708 = vmatpush1.bf16.msra.mxu0 %v1525
    %1709 = vmatprep.subr.bf16.mxu0 %v1522
    %1710 = vmatpush1.bf16.msra.mxu0 %v1521
    %1711 = vmatprep.subr.bf16.mxu0 %v1518
    %1712 = vmatpush1.bf16.msra.mxu0 %v1517
    %1713 = vmatprep.subr.bf16.mxu0 %v1514
    %1714 = vmatpush1.bf16.msra.mxu0 %v1513
    %1715 = vmatprep.subr.bf16.mxu0 %v1510
    %1716 = vmatpush1.bf16.msra.mxu0 %v1509
    %1717 = vmatprep.subr.bf16.mxu0 %v1570
    %1718 = vmatpush2.bf16.msra.mxu0 %v1569
    %1719 = vmatprep.subr.bf16.mxu0 %v1566
    %1720 = vmatpush2.bf16.msra.mxu0 %v1565
    %1721 = vmatprep.subr.bf16.mxu0 %v1562
    %1722 = vmatpush2.bf16.msra.mxu0 %v1561
    %1723 = vmatprep.subr.bf16.mxu0 %v1558
    %1724 = vmatpush2.bf16.msra.mxu0 %v1557
    %1725 = vmatprep.subr.bf16.mxu0 %v1554
    %1726 = vmatpush2.bf16.msra.mxu0 %v1553
    %1727 = vmatprep.subr.bf16.mxu0 %v1550
    %1728 = vmatpush2.bf16.msra.mxu0 %v1549
    %1729 = vmatprep.subr.bf16.mxu0 %v1546
    %1730 = vmatpush2.bf16.msra.mxu0 %v1545
    %1731 = vmatprep.subr.bf16.mxu0 %v1542
    %1732 = vmatpush2.bf16.msra.mxu0 %v1541
    %1733 = vmatprep.mubr.bf16.mxu0 %v1096
    %1734 = vmatmul.mubr.bf16.gmra.mxu0 %v1094
    %v1735 = vpop.f32.mrf.mxu0
    %v1736 = vadd.f32 %v1204, %v1735
    %v1737 = vpop.f32.mrf.mxu0
    %v1738 = vadd.f32 %v1208, %v1737
    %v1739 = vpop.f32.mrf.mxu0
    %v1740 = vpop.f32.mrf.mxu0
    %1741 = vdwg.mxu0
    %1742 = vmatprep.subr.bf16.mxu0 %v1602
    %1743 = vmatpush1.bf16.msra.mxu0 %v1601
    %1744 = vmatprep.subr.bf16.mxu0 %v1598
    %1745 = vmatpush1.bf16.msra.mxu0 %v1597
    %1746 = vmatprep.subr.bf16.mxu0 %v1594
    %1747 = vmatpush1.bf16.msra.mxu0 %v1593
    %1748 = vmatprep.subr.bf16.mxu0 %v1590
    %1749 = vmatpush1.bf16.msra.mxu0 %v1589
    %1750 = vmatprep.subr.bf16.mxu0 %v1586
    %1751 = vmatpush1.bf16.msra.mxu0 %v1585
    %1752 = vmatprep.subr.bf16.mxu0 %v1582
    %1753 = vmatpush1.bf16.msra.mxu0 %v1581
    %1754 = vmatprep.subr.bf16.mxu0 %v1578
    %1755 = vmatpush1.bf16.msra.mxu0 %v1577
    %1756 = vmatprep.subr.bf16.mxu0 %v1574
    %1757 = vmatpush1.bf16.msra.mxu0 %v1573
    %1758 = vmatprep.subr.bf16.mxu0 0
    %1759 = vmatpush2.bf16.msra.mxu0 0
    %1760 = vmatprep.subr.bf16.mxu0 0
    %1761 = vmatpush2.bf16.msra.mxu0 0
    %1762 = vmatprep.subr.bf16.mxu0 0
    %1763 = vmatpush2.bf16.msra.mxu0 0
    %1764 = vmatprep.subr.bf16.mxu0 0
    %1765 = vmatpush2.bf16.msra.mxu0 0
    %1766 = vmatprep.subr.bf16.mxu0 0
    %1767 = vmatpush2.bf16.msra.mxu0 0
    %1768 = vmatprep.subr.bf16.mxu0 0
    %1769 = vmatpush2.bf16.msra.mxu0 0
    %1770 = vmatprep.subr.bf16.mxu0 0
    %1771 = vmatpush2.bf16.msra.mxu0 0
    %1772 = vmatprep.subr.bf16.mxu0 0
    %1773 = vmatpush2.bf16.msra.mxu0 0
    %1774 = vmatprep.mubr.bf16.mxu0 0
    %1775 = vmatmul.mubr.bf16.gmra.mxu0 %v1097
    %v1776 = vpop.f32.mrf.mxu0
    %v1777 = vadd.f32 %v1736, %v1776
    %v1778 = vpop.f32.mrf.mxu0
    %v1779 = vadd.f32 %v1738, %v1778
    %v1780 = vpop.f32.mrf.mxu0
    %v1781 = vpop.f32.mrf.mxu0
    %1782 = vdwg.mxu0
    %1783 = vmatprep.subr.bf16.mxu0 %v1540
    %1784 = vmatpush1.bf16.msra.mxu0 %v1539
    %1785 = vmatprep.subr.bf16.mxu0 %v1536
    %1786 = vmatpush1.bf16.msra.mxu0 %v1535
    %1787 = vmatprep.subr.bf16.mxu0 %v1532
    %1788 = vmatpush1.bf16.msra.mxu0 %v1531
    %1789 = vmatprep.subr.bf16.mxu0 %v1528
    %1790 = vmatpush1.bf16.msra.mxu0 %v1527
    %1791 = vmatprep.subr.bf16.mxu0 %v1524
    %1792 = vmatpush1.bf16.msra.mxu0 %v1523
    %1793 = vmatprep.subr.bf16.mxu0 %v1520
    %1794 = vmatpush1.bf16.msra.mxu0 %v1519
    %1795 = vmatprep.subr.bf16.mxu0 %v1516
    %1796 = vmatpush1.bf16.msra.mxu0 %v1515
    %1797 = vmatprep.subr.bf16.mxu0 %v1512
    %1798 = vmatpush1.bf16.msra.mxu0 %v1511
    %1799 = vmatprep.subr.bf16.mxu0 %v1572
    %1800 = vmatpush2.bf16.msra.mxu0 %v1571
    %1801 = vmatprep.subr.bf16.mxu0 %v1568
    %1802 = vmatpush2.bf16.msra.mxu0 %v1567
    %1803 = vmatprep.subr.bf16.mxu0 %v1564
    %1804 = vmatpush2.bf16.msra.mxu0 %v1563
    %1805 = vmatprep.subr.bf16.mxu0 %v1560
    %1806 = vmatpush2.bf16.msra.mxu0 %v1559
    %1807 = vmatprep.subr.bf16.mxu0 %v1556
    %1808 = vmatpush2.bf16.msra.mxu0 %v1555
    %1809 = vmatprep.subr.bf16.mxu0 %v1552
    %1810 = vmatpush2.bf16.msra.mxu0 %v1551
    %1811 = vmatprep.subr.bf16.mxu0 %v1548
    %1812 = vmatpush2.bf16.msra.mxu0 %v1547
    %1813 = vmatprep.subr.bf16.mxu0 %v1544
    %1814 = vmatpush2.bf16.msra.mxu0 %v1543
    %1815 = vmatprep.mubr.bf16.mxu0 %v1096
    %1816 = vmatmul.mubr.bf16.gmra.mxu0 %v1094
    %v1817 = vpop.f32.mrf.mxu0
    %v1818 = vadd.f32 %v1212, %v1817
    %v1819 = vpop.f32.mrf.mxu0
    %v1820 = vadd.f32 %v1216, %v1819
    %v1821 = vpop.f32.mrf.mxu0
    %v1822 = vpop.f32.mrf.mxu0
    %1823 = vdwg.mxu0
    %1824 = vmatprep.subr.bf16.mxu0 %v1604
    %1825 = vmatpush1.bf16.msra.mxu0 %v1603
    %1826 = vmatprep.subr.bf16.mxu0 %v1600
    %1827 = vmatpush1.bf16.msra.mxu0 %v1599
    %1828 = vmatprep.subr.bf16.mxu0 %v1596
    %1829 = vmatpush1.bf16.msra.mxu0 %v1595
    %1830 = vmatprep.subr.bf16.mxu0 %v1592
    %1831 = vmatpush1.bf16.msra.mxu0 %v1591
    %1832 = vmatprep.subr.bf16.mxu0 %v1588
    %1833 = vmatpush1.bf16.msra.mxu0 %v1587
    %1834 = vmatprep.subr.bf16.mxu0 %v1584
    %1835 = vmatpush1.bf16.msra.mxu0 %v1583
    %1836 = vmatprep.subr.bf16.mxu0 %v1580
    %1837 = vmatpush1.bf16.msra.mxu0 %v1579
    %1838 = vmatprep.subr.bf16.mxu0 %v1576
    %1839 = vmatpush1.bf16.msra.mxu0 %v1575
    %1840 = vmatprep.subr.bf16.mxu0 0
    %1841 = vmatpush2.bf16.msra.mxu0 0
    %1842 = vmatprep.subr.bf16.mxu0 0
    %1843 = vmatpush2.bf16.msra.mxu0 0
    %1844 = vmatprep.subr.bf16.mxu0 0
    %1845 = vmatpush2.bf16.msra.mxu0 0
    %1846 = vmatprep.subr.bf16.mxu0 0
    %1847 = vmatpush2.bf16.msra.mxu0 0
    %1848 = vmatprep.subr.bf16.mxu0 0
    %1849 = vmatpush2.bf16.msra.mxu0 0
    %1850 = vmatprep.subr.bf16.mxu0 0
    %1851 = vmatpush2.bf16.msra.mxu0 0
    %1852 = vmatprep.subr.bf16.mxu0 0
    %1853 = vmatpush2.bf16.msra.mxu0 0
    %1854 = vmatprep.subr.bf16.mxu0 0
    %1855 = vmatpush2.bf16.msra.mxu0 0
    %1856 = vmatprep.mubr.bf16.mxu0 0
    %1857 = vmatmul.mubr.bf16.gmra.mxu0 %v1097
    %v1858 = vpop.f32.mrf.mxu0
    %v1859 = vadd.f32 %v1818, %v1858
    %v1860 = vpop.f32.mrf.mxu0
    %v1861 = vadd.f32 %v1820, %v1860
    %v1862 = vpop.f32.mrf.mxu0
    %v1863 = vpop.f32.mrf.mxu0
    %1864 = vdwg.mxu0
    %v1865 = vld [vmem:[%s7] sm:$0xff]
    %v1866 = vld [vmem:[%s7 + $0x8] sm:$0xff]
    %v1867 = vld [vmem:[%s7 + $0x10] sm:$0xff]
    %v1868 = vld [vmem:[%s7 + $0x18] sm:$0xff]
    %v1869 = vld [vmem:[%s7 + $0x20] sm:$0xff]
    %v1870 = vld [vmem:[%s7 + $0x28] sm:$0xff]
    %v1871 = vld [vmem:[%s7 + $0x30] sm:$0xff]
    %v1872 = vld [vmem:[%s7 + $0x38] sm:$0xff]
    %v1873 = vld [vmem:[%s7 + $0x40] sm:$0xff]
    %v1874 = vld [vmem:[%s7 + $0x48] sm:$0xff]
    %v1875 = vld [vmem:[%s7 + $0x50] sm:$0xff]
    %v1876 = vld [vmem:[%s7 + $0x58] sm:$0xff]
    %v1877 = vld [vmem:[%s7 + $0x60] sm:$0xff]
    %v1878 = vld [vmem:[%s7 + $0x68] sm:$0xff]
    %v1879 = vld [vmem:[%s7 + $0x70] sm:$0xff]
    %v1880 = vld [vmem:[%s7 + $0x78] sm:$0xff]
    %v1881 = vld [vmem:[%s7 + $0x80] sm:$0xff]
    %v1882 = vld [vmem:[%s7 + $0x88] sm:$0xff]
    %v1883 = vld [vmem:[%s7 + $0x90] sm:$0xff]
    %v1884 = vld [vmem:[%s7 + $0x98] sm:$0xff]
    %v1885 = vld [vmem:[%s7 + $0xa0] sm:$0xff]
    %v1886 = vld [vmem:[%s7 + $0xa8] sm:$0xff]
    %v1887 = vld [vmem:[%s7 + $0xb0] sm:$0xff]
    %v1888 = vld [vmem:[%s7 + $0xb8] sm:$0xff]
    %v1889 = vld [vmem:[%s7 + $0xc0] sm:$0xff]
    %v1890 = vld [vmem:[%s7 + $0xc8] sm:$0xff]
    %v1891 = vld [vmem:[%s7 + $0xd0] sm:$0xff]
    %v1892 = vld [vmem:[%s7 + $0xd8] sm:$0xff]
    %v1893 = vld [vmem:[%s7 + $0xe0] sm:$0xff]
    %v1894 = vld [vmem:[%s7 + $0xe8] sm:$0xff]
    %v1895 = vld [vmem:[%s7 + $0xf0] sm:$0xff]
    %v1896 = vld [vmem:[%s7 + $0xf8] sm:$0xff]
    %v1897 = vld [vmem:[%s7 + $0x100] sm:$0xff]
    %v1898 = vld [vmem:[%s7 + $0x108] sm:$0xff]
    %v1899 = vld [vmem:[%s7 + $0x110] sm:$0xff]
    %v1900 = vld [vmem:[%s7 + $0x118] sm:$0xff]
    %v1901 = vld [vmem:[%s7 + $0x120] sm:$0xff]
    %v1902 = vld [vmem:[%s7 + $0x128] sm:$0xff]
    %v1903 = vld [vmem:[%s7 + $0x130] sm:$0xff]
    %v1904 = vld [vmem:[%s7 + $0x138] sm:$0xff]
    %v1905 = vld [vmem:[%s7 + $0x140] sm:$0xff]
    %v1906 = vld [vmem:[%s7 + $0x148] sm:$0xff]
    %v1907 = vld [vmem:[%s7 + $0x150] sm:$0xff]
    %v1908 = vld [vmem:[%s7 + $0x158] sm:$0xff]
    %v1909 = vld [vmem:[%s7 + $0x160] sm:$0xff]
    %v1910 = vld [vmem:[%s7 + $0x168] sm:$0xff]
    %v1911 = vld [vmem:[%s7 + $0x170] sm:$0xff]
    %v1912 = vld [vmem:[%s7 + $0x178] sm:$0xff]
    %v1913 = vld [vmem:[%s7 + $0x180] sm:$0xff]
    %v1914 = vld [vmem:[%s7 + $0x188] sm:$0xff]
    %v1915 = vld [vmem:[%s7 + $0x190] sm:$0xff]
    %v1916 = vld [vmem:[%s7 + $0x198] sm:$0xff]
    %v1917 = vld [vmem:[%s7 + $0x1a0] sm:$0xff]
    %v1918 = vld [vmem:[%s7 + $0x1a8] sm:$0xff]
    %v1919 = vld [vmem:[%s7 + $0x1b0] sm:$0xff]
    %v1920 = vld [vmem:[%s7 + $0x1b8] sm:$0xff]
    %v1921 = vld [vmem:[%s7 + $0x1c0] sm:$0xff]
    %v1922 = vld [vmem:[%s7 + $0x1c8] sm:$0xff]
    %v1923 = vld [vmem:[%s7 + $0x1d0] sm:$0xff]
    %v1924 = vld [vmem:[%s7 + $0x1d8] sm:$0xff]
    %v1925 = vld [vmem:[%s7 + $0x1e0] sm:$0xff]
    %v1926 = vld [vmem:[%s7 + $0x1e8] sm:$0xff]
    %v1927 = vld [vmem:[%s7 + $0x1f0] sm:$0xff]
    %v1928 = vld [vmem:[%s7 + $0x1f8] sm:$0xff]
    %v1929 = vld [vmem:[%s7 + $0x200] sm:$0xff]
    %v1930 = vld [vmem:[%s7 + $0x208] sm:$0xff]
    %v1931 = vld [vmem:[%s7 + $0x210] sm:$0xff]
    %v1932 = vld [vmem:[%s7 + $0x218] sm:$0xff]
    %v1933 = vld [vmem:[%s7 + $0x220] sm:$0xff]
    %v1934 = vld [vmem:[%s7 + $0x228] sm:$0xff]
    %v1935 = vld [vmem:[%s7 + $0x230] sm:$0xff]
    %v1936 = vld [vmem:[%s7 + $0x238] sm:$0xff]
    %v1937 = vld [vmem:[%s7 + $0x240] sm:$0xff]
    %v1938 = vld [vmem:[%s7 + $0x248] sm:$0xff]
    %v1939 = vld [vmem:[%s7 + $0x250] sm:$0xff]
    %v1940 = vld [vmem:[%s7 + $0x258] sm:$0xff]
    %v1941 = vld [vmem:[%s7 + $0x260] sm:$0xff]
    %v1942 = vld [vmem:[%s7 + $0x268] sm:$0xff]
    %v1943 = vld [vmem:[%s7 + $0x270] sm:$0xff]
    %v1944 = vld [vmem:[%s7 + $0x278] sm:$0xff]
    %v1945 = vld [vmem:[%s7 + $0x280] sm:$0xff]
    %v1946 = vld [vmem:[%s7 + $0x288] sm:$0xff]
    %v1947 = vld [vmem:[%s7 + $0x290] sm:$0xff]
    %v1948 = vld [vmem:[%s7 + $0x298] sm:$0xff]
    %v1949 = vld [vmem:[%s7 + $0x2a0] sm:$0xff]
    %v1950 = vld [vmem:[%s7 + $0x2a8] sm:$0xff]
    %v1951 = vld [vmem:[%s7 + $0x2b0] sm:$0xff]
    %v1952 = vld [vmem:[%s7 + $0x2b8] sm:$0xff]
    %v1953 = vld [vmem:[%s7 + $0x2c0] sm:$0xff]
    %v1954 = vld [vmem:[%s7 + $0x2c8] sm:$0xff]
    %v1955 = vld [vmem:[%s7 + $0x2d0] sm:$0xff]
    %v1956 = vld [vmem:[%s7 + $0x2d8] sm:$0xff]
    %v1957 = vld [vmem:[%s7 + $0x2e0] sm:$0xff]
    %v1958 = vld [vmem:[%s7 + $0x2e8] sm:$0xff]
    %v1959 = vld [vmem:[%s7 + $0x2f0] sm:$0xff]
    %v1960 = vld [vmem:[%s7 + $0x2f8] sm:$0xff]
    %v1961 = vld [vmem:[%s8] sm:$0xf]
    %v1963 = vlaneseq
    %v1964 = vshrl.u32 %v1963, 7
    %v1965 = vsub.s32 0, %v1964
    %v1966 = vrot.slane %v1961, %v1965
    %v1967 = vlaneseq
    %v1968 = vshrl.u32 %v1967, 7
    %v1969 = vsub.s32 1, %v1968
    %v1970 = vrot.slane %v1961, %v1969
    %v1971 = vlaneseq
    %v1972 = vshrl.u32 %v1971, 7
    %v1973 = vsub.s32 2, %v1972
    %v1974 = vrot.slane %v1961, %v1973
    %v1975 = vlaneseq
    %v1976 = vshrl.u32 %v1975, 7
    %v1977 = vsub.s32 3, %v1976
    %v1978 = vrot.slane %v1961, %v1977
    %v2079 = vunpack.c.l.b16 %v1865
    %v2080 = vunpack.c.h.b16 %v1865
    %v2081 = vunpack.c.l.b16 %v1866
    %v2082 = vunpack.c.h.b16 %v1866
    %v2083 = vunpack.c.l.b16 %v1867
    %v2084 = vunpack.c.h.b16 %v1867
    %v2085 = vunpack.c.l.b16 %v1868
    %v2086 = vunpack.c.h.b16 %v1868
    %v2087 = vunpack.c.l.b16 %v1869
    %v2088 = vunpack.c.h.b16 %v1869
    %v2089 = vunpack.c.l.b16 %v1870
    %v2090 = vunpack.c.h.b16 %v1870
    %v2091 = vunpack.c.l.b16 %v1871
    %v2092 = vunpack.c.h.b16 %v1871
    %v2093 = vunpack.c.l.b16 %v1872
    %v2094 = vunpack.c.h.b16 %v1872
    %v2095 = vunpack.c.l.b16 %v1873
    %v2096 = vunpack.c.h.b16 %v1873
    %v2097 = vunpack.c.l.b16 %v1874
    %v2098 = vunpack.c.h.b16 %v1874
    %v2099 = vunpack.c.l.b16 %v1875
    %v2100 = vunpack.c.h.b16 %v1875
    %v2101 = vunpack.c.l.b16 %v1876
    %v2102 = vunpack.c.h.b16 %v1876
    %v2103 = vunpack.c.l.b16 %v1877
    %v2104 = vunpack.c.h.b16 %v1877
    %v2105 = vunpack.c.l.b16 %v1878
    %v2106 = vunpack.c.h.b16 %v1878
    %v2107 = vunpack.c.l.b16 %v1879
    %v2108 = vunpack.c.h.b16 %v1879
    %v2109 = vunpack.c.l.b16 %v1880
    %v2110 = vunpack.c.h.b16 %v1880
    %v2111 = vunpack.c.l.b16 %v1881
    %v2112 = vunpack.c.h.b16 %v1881
    %v2113 = vunpack.c.l.b16 %v1882
    %v2114 = vunpack.c.h.b16 %v1882
    %v2115 = vunpack.c.l.b16 %v1883
    %v2116 = vunpack.c.h.b16 %v1883
    %v2117 = vunpack.c.l.b16 %v1884
    %v2118 = vunpack.c.h.b16 %v1884
    %v2119 = vunpack.c.l.b16 %v1885
    %v2120 = vunpack.c.h.b16 %v1885
    %v2121 = vunpack.c.l.b16 %v1886
    %v2122 = vunpack.c.h.b16 %v1886
    %v2123 = vunpack.c.l.b16 %v1887
    %v2124 = vunpack.c.h.b16 %v1887
    %v2125 = vunpack.c.l.b16 %v1888
    %v2126 = vunpack.c.h.b16 %v1888
    %v2127 = vunpack.c.l.b16 %v1889
    %v2128 = vunpack.c.h.b16 %v1889
    %v2129 = vunpack.c.l.b16 %v1890
    %v2130 = vunpack.c.h.b16 %v1890
    %v2131 = vunpack.c.l.b16 %v1891
    %v2132 = vunpack.c.h.b16 %v1891
    %v2133 = vunpack.c.l.b16 %v1892
    %v2134 = vunpack.c.h.b16 %v1892
    %v2135 = vunpack.c.l.b16 %v1893
    %v2136 = vunpack.c.h.b16 %v1893
    %v2137 = vunpack.c.l.b16 %v1894
    %v2138 = vunpack.c.h.b16 %v1894
    %v2139 = vunpack.c.l.b16 %v1895
    %v2140 = vunpack.c.h.b16 %v1895
    %v2141 = vunpack.c.l.b16 %v1896
    %v2142 = vunpack.c.h.b16 %v1896
    %v2143 = vunpack.c.l.b16 %v1897
    %v2144 = vunpack.c.h.b16 %v1897
    %v2145 = vunpack.c.l.b16 %v1898
    %v2146 = vunpack.c.h.b16 %v1898
    %v2147 = vunpack.c.l.b16 %v1899
    %v2148 = vunpack.c.h.b16 %v1899
    %v2149 = vunpack.c.l.b16 %v1900
    %v2150 = vunpack.c.h.b16 %v1900
    %v2151 = vunpack.c.l.b16 %v1901
    %v2152 = vunpack.c.h.b16 %v1901
    %v2153 = vunpack.c.l.b16 %v1902
    %v2154 = vunpack.c.h.b16 %v1902
    %v2155 = vunpack.c.l.b16 %v1903
    %v2156 = vunpack.c.h.b16 %v1903
    %v2157 = vunpack.c.l.b16 %v1904
    %v2158 = vunpack.c.h.b16 %v1904
    %v2159 = vunpack.c.l.b16 %v1905
    %v2160 = vunpack.c.h.b16 %v1905
    %v2161 = vunpack.c.l.b16 %v1906
    %v2162 = vunpack.c.h.b16 %v1906
    %v2163 = vunpack.c.l.b16 %v1907
    %v2164 = vunpack.c.h.b16 %v1907
    %v2165 = vunpack.c.l.b16 %v1908
    %v2166 = vunpack.c.h.b16 %v1908
    %v2167 = vunpack.c.l.b16 %v1909
    %v2168 = vunpack.c.h.b16 %v1909
    %v2169 = vunpack.c.l.b16 %v1910
    %v2170 = vunpack.c.h.b16 %v1910
    %v2171 = vunpack.c.l.b16 %v1911
    %v2172 = vunpack.c.h.b16 %v1911
    %v2173 = vunpack.c.l.b16 %v1912
    %v2174 = vunpack.c.h.b16 %v1912
    %v2175 = vunpack.c.l.b16 %v1913
    %v2176 = vunpack.c.h.b16 %v1913
    %v2177 = vunpack.c.l.b16 %v1914
    %v2178 = vunpack.c.h.b16 %v1914
    %v2179 = vunpack.c.l.b16 %v1915
    %v2180 = vunpack.c.h.b16 %v1915
    %v2181 = vunpack.c.l.b16 %v1916
    %v2182 = vunpack.c.h.b16 %v1916
    %v2183 = vunpack.c.l.b16 %v1917
    %v2184 = vunpack.c.h.b16 %v1917
    %v2185 = vunpack.c.l.b16 %v1918
    %v2186 = vunpack.c.h.b16 %v1918
    %v2187 = vunpack.c.l.b16 %v1919
    %v2188 = vunpack.c.h.b16 %v1919
    %v2189 = vunpack.c.l.b16 %v1920
    %v2190 = vunpack.c.h.b16 %v1920
    %v2191 = vunpack.c.l.b16 %v1921
    %v2192 = vunpack.c.h.b16 %v1921
    %v2193 = vunpack.c.l.b16 %v1922
    %v2194 = vunpack.c.h.b16 %v1922
    %v2195 = vunpack.c.l.b16 %v1923
    %v2196 = vunpack.c.h.b16 %v1923
    %v2197 = vunpack.c.l.b16 %v1924
    %v2198 = vunpack.c.h.b16 %v1924
    %v2199 = vunpack.c.l.b16 %v1925
    %v2200 = vunpack.c.h.b16 %v1925
    %v2201 = vunpack.c.l.b16 %v1926
    %v2202 = vunpack.c.h.b16 %v1926
    %v2203 = vunpack.c.l.b16 %v1927
    %v2204 = vunpack.c.h.b16 %v1927
    %v2205 = vunpack.c.l.b16 %v1928
    %v2206 = vunpack.c.h.b16 %v1928
    %v2207 = vunpack.c.l.b16 %v1929
    %v2208 = vunpack.c.h.b16 %v1929
    %v2209 = vunpack.c.l.b16 %v1930
    %v2210 = vunpack.c.h.b16 %v1930
    %v2211 = vunpack.c.l.b16 %v1931
    %v2212 = vunpack.c.h.b16 %v1931
    %v2213 = vunpack.c.l.b16 %v1932
    %v2214 = vunpack.c.h.b16 %v1932
    %v2215 = vunpack.c.l.b16 %v1933
    %v2216 = vunpack.c.h.b16 %v1933
    %v2217 = vunpack.c.l.b16 %v1934
    %v2218 = vunpack.c.h.b16 %v1934
    %v2219 = vunpack.c.l.b16 %v1935
    %v2220 = vunpack.c.h.b16 %v1935
    %v2221 = vunpack.c.l.b16 %v1936
    %v2222 = vunpack.c.h.b16 %v1936
    %v2223 = vunpack.c.l.b16 %v1937
    %v2224 = vunpack.c.h.b16 %v1937
    %v2225 = vunpack.c.l.b16 %v1938
    %v2226 = vunpack.c.h.b16 %v1938
    %v2227 = vunpack.c.l.b16 %v1939
    %v2228 = vunpack.c.h.b16 %v1939
    %v2229 = vunpack.c.l.b16 %v1940
    %v2230 = vunpack.c.h.b16 %v1940
    %v2231 = vunpack.c.l.b16 %v1941
    %v2232 = vunpack.c.h.b16 %v1941
    %v2233 = vunpack.c.l.b16 %v1942
    %v2234 = vunpack.c.h.b16 %v1942
    %v2235 = vunpack.c.l.b16 %v1943
    %v2236 = vunpack.c.h.b16 %v1943
    %v2237 = vunpack.c.l.b16 %v1944
    %v2238 = vunpack.c.h.b16 %v1944
    %v2239 = vunpack.c.l.b16 %v1945
    %v2240 = vunpack.c.h.b16 %v1945
    %v2241 = vunpack.c.l.b16 %v1946
    %v2242 = vunpack.c.h.b16 %v1946
    %v2243 = vunpack.c.l.b16 %v1947
    %v2244 = vunpack.c.h.b16 %v1947
    %v2245 = vunpack.c.l.b16 %v1948
    %v2246 = vunpack.c.h.b16 %v1948
    %v2247 = vunpack.c.l.b16 %v1949
    %v2248 = vunpack.c.h.b16 %v1949
    %v2249 = vunpack.c.l.b16 %v1950
    %v2250 = vunpack.c.h.b16 %v1950
    %v2251 = vunpack.c.l.b16 %v1951
    %v2252 = vunpack.c.h.b16 %v1951
    %v2253 = vunpack.c.l.b16 %v1952
    %v2254 = vunpack.c.h.b16 %v1952
    %v2255 = vunpack.c.l.b16 %v1953
    %v2256 = vunpack.c.h.b16 %v1953
    %v2257 = vunpack.c.l.b16 %v1954
    %v2258 = vunpack.c.h.b16 %v1954
    %v2259 = vunpack.c.l.b16 %v1955
    %v2260 = vunpack.c.h.b16 %v1955
    %v2261 = vunpack.c.l.b16 %v1956
    %v2262 = vunpack.c.h.b16 %v1956
    %v2263 = vunpack.c.l.b16 %v1957
    %v2264 = vunpack.c.h.b16 %v1957
    %v2265 = vunpack.c.l.b16 %v1958
    %v2266 = vunpack.c.h.b16 %v1958
    %v2267 = vunpack.c.l.b16 %v1959
    %v2268 = vunpack.c.h.b16 %v1959
    %v2269 = vunpack.c.l.b16 %v1960
    %v2270 = vunpack.c.h.b16 %v1960
    %v2271 = vpack.c.b16 %v2083, %v2079
    %v2272 = vpack.c.b16 %v2084, %v2080
    %v2273 = vpack.c.b16 %v2085, %v2081
    %v2274 = vpack.c.b16 %v2086, %v2082
    %v2275 = vpack.c.b16 %v2091, %v2087
    %v2276 = vpack.c.b16 %v2092, %v2088
    %v2277 = vpack.c.b16 %v2093, %v2089
    %v2278 = vpack.c.b16 %v2094, %v2090
    %v2279 = vpack.c.b16 %v2099, %v2095
    %v2280 = vpack.c.b16 %v2100, %v2096
    %v2281 = vpack.c.b16 %v2101, %v2097
    %v2282 = vpack.c.b16 %v2102, %v2098
    %v2283 = vpack.c.b16 %v2107, %v2103
    %v2284 = vpack.c.b16 %v2108, %v2104
    %v2285 = vpack.c.b16 %v2109, %v2105
    %v2286 = vpack.c.b16 %v2110, %v2106
    %v2287 = vpack.c.b16 %v2115, %v2111
    %v2288 = vpack.c.b16 %v2116, %v2112
    %v2289 = vpack.c.b16 %v2117, %v2113
    %v2290 = vpack.c.b16 %v2118, %v2114
    %v2291 = vpack.c.b16 %v2123, %v2119
    %v2292 = vpack.c.b16 %v2124, %v2120
    %v2293 = vpack.c.b16 %v2125, %v2121
    %v2294 = vpack.c.b16 %v2126, %v2122
    %v2295 = vpack.c.b16 %v2131, %v2127
    %v2296 = vpack.c.b16 %v2132, %v2128
    %v2297 = vpack.c.b16 %v2133, %v2129
    %v2298 = vpack.c.b16 %v2134, %v2130
    %v2299 = vpack.c.b16 %v2139, %v2135
    %v2300 = vpack.c.b16 %v2140, %v2136
    %v2301 = vpack.c.b16 %v2141, %v2137
    %v2302 = vpack.c.b16 %v2142, %v2138
    %v2303 = vpack.c.b16 %v2147, %v2143
    %v2304 = vpack.c.b16 %v2148, %v2144
    %v2305 = vpack.c.b16 %v2149, %v2145
    %v2306 = vpack.c.b16 %v2150, %v2146
    %v2307 = vpack.c.b16 %v2155, %v2151
    %v2308 = vpack.c.b16 %v2156, %v2152
    %v2309 = vpack.c.b16 %v2157, %v2153
    %v2310 = vpack.c.b16 %v2158, %v2154
    %v2311 = vpack.c.b16 %v2163, %v2159
    %v2312 = vpack.c.b16 %v2164, %v2160
    %v2313 = vpack.c.b16 %v2165, %v2161
    %v2314 = vpack.c.b16 %v2166, %v2162
    %v2315 = vpack.c.b16 %v2171, %v2167
    %v2316 = vpack.c.b16 %v2172, %v2168
    %v2317 = vpack.c.b16 %v2173, %v2169
    %v2318 = vpack.c.b16 %v2174, %v2170
    %v2319 = vpack.c.b16 %v2179, %v2175
    %v2320 = vpack.c.b16 %v2180, %v2176
    %v2321 = vpack.c.b16 %v2181, %v2177
    %v2322 = vpack.c.b16 %v2182, %v2178
    %v2323 = vpack.c.b16 %v2187, %v2183
    %v2324 = vpack.c.b16 %v2188, %v2184
    %v2325 = vpack.c.b16 %v2189, %v2185
    %v2326 = vpack.c.b16 %v2190, %v2186
    %v2327 = vpack.c.b16 %v2195, %v2191
    %v2328 = vpack.c.b16 %v2196, %v2192
    %v2329 = vpack.c.b16 %v2197, %v2193
    %v2330 = vpack.c.b16 %v2198, %v2194
    %v2331 = vpack.c.b16 %v2203, %v2199
    %v2332 = vpack.c.b16 %v2204, %v2200
    %v2333 = vpack.c.b16 %v2205, %v2201
    %v2334 = vpack.c.b16 %v2206, %v2202
    %v2335 = vpack.c.b16 %v2211, %v2207
    %v2336 = vpack.c.b16 %v2212, %v2208
    %v2337 = vpack.c.b16 %v2213, %v2209
    %v2338 = vpack.c.b16 %v2214, %v2210
    %v2339 = vpack.c.b16 %v2219, %v2215
    %v2340 = vpack.c.b16 %v2220, %v2216
    %v2341 = vpack.c.b16 %v2221, %v2217
    %v2342 = vpack.c.b16 %v2222, %v2218
    %v2343 = vpack.c.b16 %v2227, %v2223
    %v2344 = vpack.c.b16 %v2228, %v2224
    %v2345 = vpack.c.b16 %v2229, %v2225
    %v2346 = vpack.c.b16 %v2230, %v2226
    %v2347 = vpack.c.b16 %v2235, %v2231
    %v2348 = vpack.c.b16 %v2236, %v2232
    %v2349 = vpack.c.b16 %v2237, %v2233
    %v2350 = vpack.c.b16 %v2238, %v2234
    %v2351 = vpack.c.b16 %v2243, %v2239
    %v2352 = vpack.c.b16 %v2244, %v2240
    %v2353 = vpack.c.b16 %v2245, %v2241
    %v2354 = vpack.c.b16 %v2246, %v2242
    %v2355 = vpack.c.b16 %v2251, %v2247
    %v2356 = vpack.c.b16 %v2252, %v2248
    %v2357 = vpack.c.b16 %v2253, %v2249
    %v2358 = vpack.c.b16 %v2254, %v2250
    %v2359 = vpack.c.b16 %v2259, %v2255
    %v2360 = vpack.c.b16 %v2260, %v2256
    %v2361 = vpack.c.b16 %v2261, %v2257
    %v2362 = vpack.c.b16 %v2262, %v2258
    %v2363 = vpack.c.b16 %v2267, %v2263
    %v2364 = vpack.c.b16 %v2268, %v2264
    %v2365 = vpack.c.b16 %v2269, %v2265
    %v2366 = vpack.c.b16 %v2270, %v2266
    %2463 = vmatprep.subr.bf16.mxu0 %v2300
    %2464 = vmatpush1.bf16.msra.mxu0 %v2299
    %2465 = vmatprep.subr.bf16.mxu0 %v2296
    %2466 = vmatpush1.bf16.msra.mxu0 %v2295
    %2467 = vmatprep.subr.bf16.mxu0 %v2292
    %2468 = vmatpush1.bf16.msra.mxu0 %v2291
    %2469 = vmatprep.subr.bf16.mxu0 %v2288
    %2470 = vmatpush1.bf16.msra.mxu0 %v2287
    %2471 = vmatprep.subr.bf16.mxu0 %v2284
    %2472 = vmatpush1.bf16.msra.mxu0 %v2283
    %2473 = vmatprep.subr.bf16.mxu0 %v2280
    %2474 = vmatpush1.bf16.msra.mxu0 %v2279
    %2475 = vmatprep.subr.bf16.mxu0 %v2276
    %2476 = vmatpush1.bf16.msra.mxu0 %v2275
    %2477 = vmatprep.subr.bf16.mxu0 %v2272
    %2478 = vmatpush1.bf16.msra.mxu0 %v2271
    %2479 = vmatprep.subr.bf16.mxu0 %v2332
    %2480 = vmatpush2.bf16.msra.mxu0 %v2331
    %2481 = vmatprep.subr.bf16.mxu0 %v2328
    %2482 = vmatpush2.bf16.msra.mxu0 %v2327
    %2483 = vmatprep.subr.bf16.mxu0 %v2324
    %2484 = vmatpush2.bf16.msra.mxu0 %v2323
    %2485 = vmatprep.subr.bf16.mxu0 %v2320
    %2486 = vmatpush2.bf16.msra.mxu0 %v2319
    %2487 = vmatprep.subr.bf16.mxu0 %v2316
    %2488 = vmatpush2.bf16.msra.mxu0 %v2315
    %2489 = vmatprep.subr.bf16.mxu0 %v2312
    %2490 = vmatpush2.bf16.msra.mxu0 %v2311
    %2491 = vmatprep.subr.bf16.mxu0 %v2308
    %2492 = vmatpush2.bf16.msra.mxu0 %v2307
    %2493 = vmatprep.subr.bf16.mxu0 %v2304
    %2494 = vmatpush2.bf16.msra.mxu0 %v2303
    %2495 = vmatprep.mubr.bf16.mxu0 %v1101
    %2496 = vmatmul.mubr.bf16.gmra.mxu0 %v1099
    %v2497 = vpop.f32.mrf.mxu0
    %v2498 = vadd.f32 %v1966, %v2497
    %v2499 = vpop.f32.mrf.mxu0
    %v2500 = vadd.f32 %v1970, %v2499
    %v2501 = vpop.f32.mrf.mxu0
    %v2502 = vpop.f32.mrf.mxu0
    %2503 = vdwg.mxu0
    %2504 = vmatprep.subr.bf16.mxu0 %v2364
    %2505 = vmatpush1.bf16.msra.mxu0 %v2363
    %2506 = vmatprep.subr.bf16.mxu0 %v2360
    %2507 = vmatpush1.bf16.msra.mxu0 %v2359
    %2508 = vmatprep.subr.bf16.mxu0 %v2356
    %2509 = vmatpush1.bf16.msra.mxu0 %v2355
    %2510 = vmatprep.subr.bf16.mxu0 %v2352
    %2511 = vmatpush1.bf16.msra.mxu0 %v2351
    %2512 = vmatprep.subr.bf16.mxu0 %v2348
    %2513 = vmatpush1.bf16.msra.mxu0 %v2347
    %2514 = vmatprep.subr.bf16.mxu0 %v2344
    %2515 = vmatpush1.bf16.msra.mxu0 %v2343
    %2516 = vmatprep.subr.bf16.mxu0 %v2340
    %2517 = vmatpush1.bf16.msra.mxu0 %v2339
    %2518 = vmatprep.subr.bf16.mxu0 %v2336
    %2519 = vmatpush1.bf16.msra.mxu0 %v2335
    %2520 = vmatprep.subr.bf16.mxu0 0
    %2521 = vmatpush2.bf16.msra.mxu0 0
    %2522 = vmatprep.subr.bf16.mxu0 0
    %2523 = vmatpush2.bf16.msra.mxu0 0
    %2524 = vmatprep.subr.bf16.mxu0 0
    %2525 = vmatpush2.bf16.msra.mxu0 0
    %2526 = vmatprep.subr.bf16.mxu0 0
    %2527 = vmatpush2.bf16.msra.mxu0 0
    %2528 = vmatprep.subr.bf16.mxu0 0
    %2529 = vmatpush2.bf16.msra.mxu0 0
    %2530 = vmatprep.subr.bf16.mxu0 0
    %2531 = vmatpush2.bf16.msra.mxu0 0
    %2532 = vmatprep.subr.bf16.mxu0 0
    %2533 = vmatpush2.bf16.msra.mxu0 0
    %2534 = vmatprep.subr.bf16.mxu0 0
    %2535 = vmatpush2.bf16.msra.mxu0 0
    %2536 = vmatprep.mubr.bf16.mxu0 0
    %2537 = vmatmul.mubr.bf16.gmra.mxu0 %v1102
    %v2538 = vpop.f32.mrf.mxu0
    %v2539 = vadd.f32 %v2498, %v2538
    %v2540 = vpop.f32.mrf.mxu0
    %v2541 = vadd.f32 %v2500, %v2540
    %v2542 = vpop.f32.mrf.mxu0
    %v2543 = vpop.f32.mrf.mxu0
    %2544 = vdwg.mxu0
    %2545 = vmatprep.subr.bf16.mxu0 %v2302
    %2546 = vmatpush1.bf16.msra.mxu0 %v2301
    %2547 = vmatprep.subr.bf16.mxu0 %v2298
    %2548 = vmatpush1.bf16.msra.mxu0 %v2297
    %2549 = vmatprep.subr.bf16.mxu0 %v2294
    %2550 = vmatpush1.bf16.msra.mxu0 %v2293
    %2551 = vmatprep.subr.bf16.mxu0 %v2290
    %2552 = vmatpush1.bf16.msra.mxu0 %v2289
    %2553 = vmatprep.subr.bf16.mxu0 %v2286
    %2554 = vmatpush1.bf16.msra.mxu0 %v2285
    %2555 = vmatprep.subr.bf16.mxu0 %v2282
    %2556 = vmatpush1.bf16.msra.mxu0 %v2281
    %2557 = vmatprep.subr.bf16.mxu0 %v2278
    %2558 = vmatpush1.bf16.msra.mxu0 %v2277
    %2559 = vmatprep.subr.bf16.mxu0 %v2274
    %2560 = vmatpush1.bf16.msra.mxu0 %v2273
    %2561 = vmatprep.subr.bf16.mxu0 %v2334
    %2562 = vmatpush2.bf16.msra.mxu0 %v2333
    %2563 = vmatprep.subr.bf16.mxu0 %v2330
    %2564 = vmatpush2.bf16.msra.mxu0 %v2329
    %2565 = vmatprep.subr.bf16.mxu0 %v2326
    %2566 = vmatpush2.bf16.msra.mxu0 %v2325
    %2567 = vmatprep.subr.bf16.mxu0 %v2322
    %2568 = vmatpush2.bf16.msra.mxu0 %v2321
    %2569 = vmatprep.subr.bf16.mxu0 %v2318
    %2570 = vmatpush2.bf16.msra.mxu0 %v2317
    %2571 = vmatprep.subr.bf16.mxu0 %v2314
    %2572 = vmatpush2.bf16.msra.mxu0 %v2313
    %2573 = vmatprep.subr.bf16.mxu0 %v2310
    %2574 = vmatpush2.bf16.msra.mxu0 %v2309
    %2575 = vmatprep.subr.bf16.mxu0 %v2306
    %2576 = vmatpush2.bf16.msra.mxu0 %v2305
    %2577 = vmatprep.mubr.bf16.mxu0 %v1101
    %2578 = vmatmul.mubr.bf16.gmra.mxu0 %v1099
    %v2579 = vpop.f32.mrf.mxu0
    %v2580 = vadd.f32 %v1974, %v2579
    %v2581 = vpop.f32.mrf.mxu0
    %v2582 = vadd.f32 %v1978, %v2581
    %v2583 = vpop.f32.mrf.mxu0
    %v2584 = vpop.f32.mrf.mxu0
    %2585 = vdwg.mxu0
    %2586 = vmatprep.subr.bf16.mxu0 %v2366
    %2587 = vmatpush1.bf16.msra.mxu0 %v2365
    %2588 = vmatprep.subr.bf16.mxu0 %v2362
    %2589 = vmatpush1.bf16.msra.mxu0 %v2361
    %2590 = vmatprep.subr.bf16.mxu0 %v2358
    %2591 = vmatpush1.bf16.msra.mxu0 %v2357
    %2592 = vmatprep.subr.bf16.mxu0 %v2354
    %2593 = vmatpush1.bf16.msra.mxu0 %v2353
    %2594 = vmatprep.subr.bf16.mxu0 %v2350
    %2595 = vmatpush1.bf16.msra.mxu0 %v2349
    %2596 = vmatprep.subr.bf16.mxu0 %v2346
    %2597 = vmatpush1.bf16.msra.mxu0 %v2345
    %2598 = vmatprep.subr.bf16.mxu0 %v2342
    %2599 = vmatpush1.bf16.msra.mxu0 %v2341
    %2600 = vmatprep.subr.bf16.mxu0 %v2338
    %2601 = vmatpush1.bf16.msra.mxu0 %v2337
    %2602 = vmatprep.subr.bf16.mxu0 0
    %2603 = vmatpush2.bf16.msra.mxu0 0
    %2604 = vmatprep.subr.bf16.mxu0 0
    %2605 = vmatpush2.bf16.msra.mxu0 0
    %2606 = vmatprep.subr.bf16.mxu0 0
    %2607 = vmatpush2.bf16.msra.mxu0 0
    %2608 = vmatprep.subr.bf16.mxu0 0
    %2609 = vmatpush2.bf16.msra.mxu0 0
    %2610 = vmatprep.subr.bf16.mxu0 0
    %2611 = vmatpush2.bf16.msra.mxu0 0
    %2612 = vmatprep.subr.bf16.mxu0 0
    %2613 = vmatpush2.bf16.msra.mxu0 0
    %2614 = vmatprep.subr.bf16.mxu0 0
    %2615 = vmatpush2.bf16.msra.mxu0 0
    %2616 = vmatprep.subr.bf16.mxu0 0
    %2617 = vmatpush2.bf16.msra.mxu0 0
    %2618 = vmatprep.mubr.bf16.mxu0 0
    %2619 = vmatmul.mubr.bf16.gmra.mxu0 %v1102
    %v2620 = vpop.f32.mrf.mxu0
    %v2621 = vadd.f32 %v2580, %v2620
    %v2622 = vpop.f32.mrf.mxu0
    %v2623 = vadd.f32 %v2582, %v2622
    %v2624 = vpop.f32.mrf.mxu0
    %v2625 = vpop.f32.mrf.mxu0
    %2626 = vdwg.mxu0
    %v2627 = vsub.f32 0.0, %v1777
    %v2628 = vmul.f32 %v2627, 1.442695
    %v2629 = vpow.pop %v2628
    %v2630 = vadd.f32 %v2629, 1.0
    %v2631 = vrcp.pop %v2630
    %v2632 = vmul.f32 1.0, %v2631
    %v2633 = vsub.f32 0.0, %v1779
    %v2634 = vmul.f32 %v2633, 1.442695
    %v2635 = vpow.pop %v2634
    %v2636 = vadd.f32 %v2635, 1.0
    %v2637 = vrcp.pop %v2636
    %v2638 = vmul.f32 1.0, %v2637
    %v2639 = vtanh.pop %v1859
    %v2640 = vsub.f32 0.0, %v1861
    %v2641 = vmul.f32 %v2640, 1.442695
    %v2642 = vpow.pop %v2641
    %v2643 = vadd.f32 %v2642, 1.0
    %v2644 = vrcp.pop %v2643
    %v2645 = vmul.f32 1.0, %v2644
    %v2646 = vmul.f32 %v2638, %v1089
    %v2647 = vmul.f32 %v2632, %v2639
    %v2648 = vadd.f32 %v2646, %v2647
    %v2649 = vtanh.pop %v2648
    %v2650 = vmul.f32 %v2645, %v2649
    %v2651 = vsub.f32 0.0, %v2539
    %v2652 = vmul.f32 %v2651, 1.442695
    %v2653 = vpow.pop %v2652
    %v2654 = vadd.f32 %v2653, 1.0
    %v2655 = vrcp.pop %v2654
    %v2656 = vmul.f32 1.0, %v2655
    %v2657 = vsub.f32 0.0, %v2541
    %v2658 = vmul.f32 %v2657, 1.442695
    %v2659 = vpow.pop %v2658
    %v2660 = vadd.f32 %v2659, 1.0
    %v2661 = vrcp.pop %v2660
    %v2662 = vmul.f32 1.0, %v2661
    %v2663 = vtanh.pop %v2621
    %v2664 = vsub.f32 0.0, %v2623
    %v2665 = vmul.f32 %v2664, 1.442695
    %v2666 = vpow.pop %v2665
    %v2667 = vadd.f32 %v2666, 1.0
    %v2668 = vrcp.pop %v2667
    %v2669 = vmul.f32 1.0, %v2668
    %v2670 = vmul.f32 %v2662, %v1091
    %v2671 = vmul.f32 %v2656, %v2663
    %v2672 = vadd.f32 %v2670, %v2671
    %v2673 = vtanh.pop %v2672
    %v2674 = vmul.f32 %v2669, %v2673
    %s2675 = smul.u32 %s1083, 2
    %s2676 = scalar_lea.vmem %s9, %s2675
    %2677 = vst [vmem:[%s2676] sm:$0x3] %v2650
    %s2678 = smul.u32 %s1092, 2
    %s2679 = scalar_lea.vmem %s10, %s2678
    %2680 = vst [vmem:[%s2679] sm:$0x3] %v2674
  $region49: #{bilstm_hidden_forward.1} parent=0 // loop_footer
    %s1087 = sadd.s32 1, %s1083
  $region50: #{bilstm_hidden_forward.1} parent=0 // loop_footer_branch
    %1082 = sbr.rel target = $region46
  $region51: #{bilstm_hidden_forward.1} parent=0 // loop_exit
    _
  // Predicated region
  $region52: #{bilstm_hidden_forward.1} parent=0 // pred_check
    _
  $region53: #{bilstm_hidden_forward.1} parent=0 // pred_check_branch
    %2682 = sbr.rel (0) target = $region55
  $region54: #{bilstm_hidden_forward.1} parent=0 // pred_region
    _
  $region55: #{bilstm_hidden_forward.1} parent=0 // pred_fallthru
    _
  // Predicated region
  $region56: #{bilstm_hidden_forward.1} parent=0 // pred_check
    _
  $region57: #{bilstm_hidden_forward.1} parent=0 // pred_check_branch
    %2684 = sbr.rel (0) target = $region59
  $region58: #{bilstm_hidden_forward.1} parent=0 // pred_region
    _
  $region59: #{bilstm_hidden_forward.1} parent=0 // pred_fallthru
    _
  // Predicated region
  $region60: #{bilstm_hidden_forward.1} parent=0 // pred_check
    _
  $region61: #{bilstm_hidden_forward.1} parent=0 // pred_check_branch
    %2686 = sbr.rel (0) target = $region63
  $region62: #{bilstm_hidden_forward.1} parent=0 // pred_region
    _
  $region63: #{bilstm_hidden_forward.1} parent=0 // pred_fallthru
    _
  // Predicated region
  $region64: #{bilstm_hidden_forward.1} parent=0 // pred_check
    _
  $region65: #{bilstm_hidden_forward.1} parent=0 // pred_check_branch
    %2688 = sbr.rel (0) target = $region67
  $region66: #{bilstm_hidden_forward.1} parent=0 // pred_region
    _
  $region67: #{bilstm_hidden_forward.1} parent=0 // pred_fallthru
    _

</llo_original>
